<compile_context>
chip_gen: v7x
topology: tpu7x:2x2x1
jax: 0.10.0
libtpu: 0.0.40
codegen_flags: <defaults>
</compile_context>

<pallas_src>
import math
import numpy as np
import jax
import jax.numpy as jnp
from jax.experimental import pallas as pl
from jax.experimental.pallas import tpu as pltpu

# ---------------- small, module-consistent configuration ----------------
B = 2              # batch
C = 4              # latent channels
H = W = 16         # latent spatial  -> latent_dim = C*H*W = 1024
HW = H * W         # 256 (lane axis, multiple of 128)
D = 32             # stand-in UNet hidden width
S = 8              # context (CLIP) sequence length
CTX = 32           # context embedding dim
TEMB = 32          # sinusoidal time-embedding dim
N_STEPS = 1000
LINEAR_START = 0.00085
LINEAR_END = 0.0120
LATENT_SCALING_FACTOR = 0.18215  # kept for parity with __init__ (unused in forward)

# ---------------- beta / alpha_bar schedule (exactly as in __init__) ----------------
_beta64 = np.linspace(LINEAR_START ** 0.5, LINEAR_END ** 0.5, N_STEPS, dtype=np.float64) ** 2
BETA = jnp.asarray(_beta64, dtype=jnp.float32)
_alpha_bar64 = np.cumprod(1.0 - _beta64)
ALPHA_BAR = jnp.asarray(_alpha_bar64, dtype=jnp.float32)
SQRT_ALPHA_BAR = jnp.sqrt(ALPHA_BAR)
SQRT_ONE_MINUS_ALPHA_BAR = jnp.sqrt(1.0 - ALPHA_BAR)


def _silu(v):
    # explicit SiLU: v * sigmoid(v); exp on the EUP, one VPU divide on tiny data
    return v / (1.0 + jnp.exp(-v))


# =====================================================================
# Kernel 1: forward()  ->  epsilon_cond(x_t, t, context)
#   Transposed, lane-dense layout; the whole batch is lane-concatenated so the
#   heavy matmuls see a single (., B*HW = 512) operand.  One invocation, no grid.
# =====================================================================
def unet_eps_kernel(x_ref, tembT_ref, ctx_ref,
                    w_inT_ref, b_inT_ref, w_tT_ref,
                    wqT_ref, wkvT_ref,
                    w_outT_ref, wow_outT_ref, b_outT_ref,
                    out_ref):
    # x_ref: (B, C, HW)   tembT_ref: (TEMB, B)   ctx_ref: (B, S, CTX)
    # weights pre-transposed / pre-fused on the host (see prepare_unet_params).
    inv_sqrt_d = 1.0 / math.sqrt(D)

    # time MLP -> per-batch bias columns, b_in folded in: (D, B)
    t_proj = _silu(jnp.dot(w_tT_ref[...], tembT_ref[...],
                           preferred_element_type=jnp.float32))
    bias_all = t_proj + b_inT_ref[...]                                   # (D, B)

    # lane-concatenate the batch: activations become (., B*HW = 512), lane-dense
    x_wide = jnp.concatenate([x_ref[b] for b in range(B)], axis=-1)      # (C, B*HW)
    bias_wide = jnp.concatenate(
        [jnp.broadcast_to(bias_all[:, b:b + 1], (D, HW)) for b in range(B)],
        axis=-1)                                                         # (D, B*HW)

    # input 1x1 conv (as matmul) + timestep injection, one MXU push for the batch
    h_wide = _silu(jnp.dot(w_inT_ref[...], x_wide,
                           preferred_element_type=jnp.float32) + bias_wide)  # (D, B*HW)
    q_wide = jnp.dot(wqT_ref[...], h_wide,
                     preferred_element_type=jnp.float32)                 # (D, B*HW)

    # cross-attention (per-batch keys/values; q slices are 256-lane aligned)
    attn_parts = []
    for b in range(B):                                                   # static unroll
        # fused K/V projection: (2D, CTX) x (S, CTX) -> (2D, S)
        kv = jax.lax.dot_general(wkvT_ref[...], ctx_ref[b],
                                 (((1,), (1,)), ((), ())),
                                 preferred_element_type=jnp.float32)
        k = kv[:D]                                                       # (D, S)
        v = kv[D:]                                                       # (D, S)
        q = q_wide[:, b * HW:(b + 1) * HW]                               # (D, HW)

        # scores contract over D -> (S, HW); softmax over the sublane (S) axis
        s = jax.lax.dot_general(k, q, (((0,), (0,)), ((), ())),
                                preferred_element_type=jnp.float32) * inv_sqrt_d
        s = s - jnp.max(s, axis=0, keepdims=True)
        p = jnp.exp(s)
        p = p * pl.reciprocal(jnp.sum(p, axis=0, keepdims=True), approx=True)

        attn_parts.append(jnp.dot(v, p, preferred_element_type=jnp.float32))  # (D, HW)

    attn_wide = jnp.concatenate(attn_parts, axis=-1)                     # (D, B*HW)

    # eps^T = w_out^T h^T + (wo w_out)^T attn^T + b_out^T   (wo @ w_out pre-folded)
    eps_wide = (jnp.dot(w_outT_ref[...], h_wide, preferred_element_type=jnp.float32)
                + jnp.dot(wow_outT_ref[...], attn_wide, preferred_element_type=jnp.float32)
                + b_outT_ref[...])                                       # (C, B*HW)

    for b in range(B):
        out_ref[b] = eps_wide[:, b * HW:(b + 1) * HW]                    # aligned lane slice


def sinusoidal_embedding(t):
    half = TEMB // 2
    freqs = jnp.exp(-math.log(10000.0) * jnp.arange(half, dtype=jnp.float32) / half)
    args = t.astype(jnp.float32)[:, None] * freqs[None, :]
    return jnp.concatenate([jnp.cos(args), jnp.sin(args)], axis=-1)      # (B, TEMB)


@jax.jit
def latent_diffusion_forward(x_nchw, t, context, prep):
    """Predict epsilon_cond(x_t, t, context).  x_nchw: (B, C, H, W) float32."""
    # TODO(synk): the real UNetModel definition is not provided; this drives a
    # minimal stand-in epsilon predictor whose hot path runs in one Pallas kernel.
    x_flat = x_nchw.reshape(B, C, HW)                 # contiguous reshape, no transpose
    tembT = sinusoidal_embedding(t).T                 # (TEMB, B)

    out_flat = pl.pallas_call(
        unet_eps_kernel,
        out_shape=jax.ShapeDtypeStruct((B, C, HW), jnp.float32),
    )(x_flat, tembT, context,
      prep["w_inT"], prep["b_inT"], prep["w_tT"],
      prep["wqT"], prep["wkvT"],
      prep["w_outT"], prep["wow_outT"], prep["b_outT"])

    return out_flat.reshape(B, C, H, W)


# =====================================================================
# Kernel 2: add_noise()  (forward diffusion step, exact semantics)
#   Per-batch schedule scalars in SMEM; (B, C, HW) tensors lane-dense in VMEM.
# =====================================================================
def add_noise_kernel(a_ref, s_ref, orig_ref, noise_ref, out_ref):
    # a_ref, s_ref: SMEM (B,) f32 scalars; orig/noise/out: (B, C, HW) VMEM
    for b in range(B):                                                   # static unroll
        out_ref[b] = a_ref[b] * orig_ref[b] + s_ref[b] * noise_ref[b]


@jax.jit
def add_noise(original, noise, t):
    """original, noise: (B, C, H, W) float32;  t: (B,) int32."""
    a = jnp.take(SQRT_ALPHA_BAR, t)                                      # (B,)
    s = jnp.take(SQRT_ONE_MINUS_ALPHA_BAR, t)                            # (B,)

    out = pl.pallas_call(
        add_noise_kernel,
        out_shape=jax.ShapeDtypeStruct((B, C, HW), original.dtype),
        in_specs=[
            pl.BlockSpec(memory_space=pltpu.MemorySpace.SMEM),
            pl.BlockSpec(memory_space=pltpu.MemorySpace.SMEM),
            pl.BlockSpec(memory_space=pltpu.MemorySpace.VMEM),
            pl.BlockSpec(memory_space=pltpu.MemorySpace.VMEM),
        ],
        out_specs=pl.BlockSpec(memory_space=pltpu.MemorySpace.VMEM),
    )(a, s, original.reshape(B, C, HW), noise.reshape(B, C, HW))
    return out.reshape(original.shape)


# =====================================================================
# Deterministic parameter init + one-time host-side weight fusion
# =====================================================================
def init_params(key):
    ks = jax.random.split(key, 8)
    sc = 0.05
    return {
        "w_in":  sc * jax.random.normal(ks[0], (C, D),    jnp.float32),
        "b_in":  jnp.zeros((1, D), jnp.float32),
        "w_t":   sc * jax.random.normal(ks[1], (TEMB, D), jnp.float32),
        "wq":    sc * jax.random.normal(ks[2], (D, D),    jnp.float32),
        "wk":    sc * jax.random.normal(ks[3], (CTX, D),  jnp.float32),
        "wv":    sc * jax.random.normal(ks[4], (CTX, D),  jnp.float32),
        "wo":    sc * jax.random.normal(ks[5], (D, D),    jnp.float32),
        "w_out": sc * jax.random.normal(ks[6], (D, C),    jnp.float32),
        "b_out": jnp.zeros((1, C), jnp.float32),
    }


def prepare_unet_params(params):
    """One-time host-side transposition / fusion for the lane-dense kernel."""
    wkv = jnp.concatenate([params["wk"], params["wv"]], axis=1)          # (CTX, 2D)
    return {
        "w_inT":    params["w_in"].T,                                    # (D, C)
        "b_inT":    params["b_in"].T,                                    # (D, 1)
        "w_tT":     params["w_t"].T,                                     # (D, TEMB)
        "wqT":      params["wq"].T,                                      # (D, D)
        "wkvT":     wkv.T,                                               # (2D, CTX)
        "w_outT":   params["w_out"].T,                                   # (C, D)
        "wow_outT": (params["wo"] @ params["w_out"]).T,                  # (C, D), exact algebra
        "b_outT":   params["b_out"].T,                                   # (C, 1)
    }


# ---------------- pure-JAX references (for correctness checks only) ----------------
def unet_eps_reference(x_nchw, t, context, params):
    temb = sinusoidal_embedding(t)                                       # (B, TEMB)
    tp = jax.nn.silu(temb @ params["w_t"])                               # (B, D)
    xs = x_nchw.reshape(B, C, HW).transpose(0, 2, 1)                     # (B, HW, C)
    h = jax.nn.silu(xs @ params["w_in"] + params["b_in"] + tp[:, None, :])
    q = h @ params["wq"]
    k = context @ params["wk"]
    v = context @ params["wv"]
    sc = jnp.einsum("bqd,bkd->bqk", q, k) / math.sqrt(D)
    p = jax.nn.softmax(sc, axis=-1)
    attn = jnp.einsum("bqk,bkd->bqd", p, v)
    eps = (h + attn @ params["wo"]) @ params["w_out"] + params["b_out"]  # (B, HW, C)
    return eps.transpose(0, 2, 1).reshape(B, C, H, W)


if __name__ == "__main__":
    key = jax.random.PRNGKey(0)
    k_x, k_t, k_ctx, k_noise, k_params = jax.random.split(key, 5)

    x = jax.random.normal(k_x, (B, C, H, W), jnp.float32)
    t = jax.random.randint(k_t, (B,), 0, N_STEPS, dtype=jnp.int32)
    context = jax.random.normal(k_ctx, (B, S, CTX), jnp.float32)
    noise = jax.random.normal(k_noise, (B, C, H, W), jnp.float32)
    params = init_params(k_params)
    prep = prepare_unet_params(params)

    # forward(): predict eps_cond(x_t, t, context)
    eps = latent_diffusion_forward(x, t, context, prep)
    # add_noise(): forward diffusion q(x_t | x_0)
    noisy = add_noise(x, noise, t)
    jax.block_until_ready((eps, noisy))

    # correctness checks against pure-JAX references
    eps_ref = unet_eps_reference(x, t, context, params)
    a_ref = jnp.take(SQRT_ALPHA_BAR, t)[:, None, None, None]
    s_ref = jnp.take(SQRT_ONE_MINUS_ALPHA_BAR, t)[:, None, None, None]
    noisy_ref = a_ref * x + s_ref * noise

    assert eps.shape == (B, C, H, W) and eps.dtype == jnp.float32
    assert noisy.shape == (B, C, H, W) and noisy.dtype == jnp.float32
    assert bool(jnp.allclose(eps, eps_ref, atol=3e-3, rtol=3e-3))
    assert bool(jnp.allclose(noisy, noisy_ref, atol=1e-5, rtol=1e-5))
    print("KERNEL_OK")
</pallas_src>

<mosaic_0001>
module attributes {stable_mosaic.version = 11 : i64} {
  func.func @unet_eps_kernel(%arg0: memref<2x4x256xf32, #tpu.memory_space<vmem>>, %arg1: memref<32x2xf32, #tpu.memory_space<vmem>>, %arg2: memref<2x8x32xf32, #tpu.memory_space<vmem>>, %arg3: memref<32x4xf32, #tpu.memory_space<vmem>>, %arg4: memref<32x1xf32, #tpu.memory_space<vmem>>, %arg5: memref<32x32xf32, #tpu.memory_space<vmem>>, %arg6: memref<32x32xf32, #tpu.memory_space<vmem>>, %arg7: memref<64x32xf32, #tpu.memory_space<vmem>>, %arg8: memref<4x32xf32, #tpu.memory_space<vmem>>, %arg9: memref<4x32xf32, #tpu.memory_space<vmem>>, %arg10: memref<4x1xf32, #tpu.memory_space<vmem>>, %arg11: memref<2x4x256xf32, #tpu.memory_space<vmem>>) attributes {dimension_semantics = [], scalar_prefetch = 0 : i64, scratch_operands = 0 : i64, tpu.core_type = #tpu.core_type<tc>} {
    %c0 = arith.constant 0 : index
    %c0_0 = arith.constant 0 : index
    %0 = vector.load %arg5[%c0, %c0_0] : memref<32x32xf32, #tpu.memory_space<vmem>>, vector<32x32xf32>
    %c0_1 = arith.constant 0 : index
    %c0_2 = arith.constant 0 : index
    %1 = vector.load %arg1[%c0_1, %c0_2] : memref<32x2xf32, #tpu.memory_space<vmem>>, vector<32x2xf32>
    %cst = arith.constant dense<0.000000e+00> : vector<32x2xf32>
    %2 = tpu.matmul %0, %1, %cst {dimension_numbers = #tpu.dot_dimension_numbers<[1], [0], [0], [1], [0, 0, 1, 1], [], []>} : vector<32x32xf32>, vector<32x2xf32>, vector<32x2xf32> -> vector<32x2xf32>
    %cst_3 = arith.constant 0.000000e+00 : f32
    %3 = vector.broadcast %cst_3 : f32 to vector<32x2xf32>
    %4 = arith.subf %3, %2 : vector<32x2xf32>
    %5 = math.exp %4 : vector<32x2xf32>
    %cst_4 = arith.constant 1.000000e+00 : f32
    %6 = vector.broadcast %cst_4 : f32 to vector<32x2xf32>
    %7 = arith.addf %6, %5 : vector<32x2xf32>
    %8 = arith.divf %2, %7 : vector<32x2xf32>
    %c0_5 = arith.constant 0 : index
    %c0_6 = arith.constant 0 : index
    %9 = vector.load %arg4[%c0_5, %c0_6] : memref<32x1xf32, #tpu.memory_space<vmem>>, vector<32x1xf32>
    %10 = vector.broadcast %9 : vector<32x1xf32> to vector<32x2xf32>
    %11 = arith.addf %8, %10 : vector<32x2xf32>
    %c0_7 = arith.constant 0 : index
    %c0_8 = arith.constant 0 : index
    %c0_9 = arith.constant 0 : index
    %12 = vector.load %arg0[%c0_7, %c0_8, %c0_9] : memref<2x4x256xf32, #tpu.memory_space<vmem>>, vector<1x4x256xf32>
    %13 = vector.shape_cast %12 : vector<1x4x256xf32> to vector<4x256xf32>
    %c1 = arith.constant 1 : index
    %c0_10 = arith.constant 0 : index
    %c0_11 = arith.constant 0 : index
    %14 = vector.load %arg0[%c1, %c0_10, %c0_11] : memref<2x4x256xf32, #tpu.memory_space<vmem>>, vector<1x4x256xf32>
    %15 = vector.shape_cast %14 : vector<1x4x256xf32> to vector<4x256xf32>
    %16 = tpu.concatenate %13, %15 in 1 : vector<4x256xf32>, vector<4x256xf32> -> vector<4x512xf32>
    %17 = vector.extract_strided_slice %11 {offsets = [0, 0], sizes = [32, 1], strides = [1, 1]} : vector<32x2xf32> to vector<32x1xf32>
    %18 = vector.shape_cast %17 : vector<32x1xf32> to vector<32x1xf32>
    %19 = vector.broadcast %18 : vector<32x1xf32> to vector<32x256xf32>
    %20 = vector.extract_strided_slice %11 {offsets = [0, 1], sizes = [32, 1], strides = [1, 1]} : vector<32x2xf32> to vector<32x1xf32>
    %21 = vector.shape_cast %20 : vector<32x1xf32> to vector<32x1xf32>
    %22 = vector.broadcast %21 : vector<32x1xf32> to vector<32x256xf32>
    %23 = tpu.concatenate %19, %22 in 1 : vector<32x256xf32>, vector<32x256xf32> -> vector<32x512xf32>
    %c0_12 = arith.constant 0 : index
    %c0_13 = arith.constant 0 : index
    %24 = vector.load %arg3[%c0_12, %c0_13] : memref<32x4xf32, #tpu.memory_space<vmem>>, vector<32x4xf32>
    %cst_14 = arith.constant dense<0.000000e+00> : vector<32x512xf32>
    %25 = tpu.matmul %24, %16, %cst_14 {dimension_numbers = #tpu.dot_dimension_numbers<[1], [0], [0], [1], [0, 0, 1, 1], [], []>} : vector<32x4xf32>, vector<4x512xf32>, vector<32x512xf32> -> vector<32x512xf32>
    %26 = arith.addf %25, %23 : vector<32x512xf32>
    %cst_15 = arith.constant 0.000000e+00 : f32
    %27 = vector.broadcast %cst_15 : f32 to vector<32x512xf32>
    %28 = arith.subf %27, %26 : vector<32x512xf32>
    %29 = math.exp %28 : vector<32x512xf32>
    %cst_16 = arith.constant 1.000000e+00 : f32
    %30 = vector.broadcast %cst_16 : f32 to vector<32x512xf32>
    %31 = arith.addf %30, %29 : vector<32x512xf32>
    %32 = arith.divf %26, %31 : vector<32x512xf32>
    %c0_17 = arith.constant 0 : index
    %c0_18 = arith.constant 0 : index
    %33 = vector.load %arg6[%c0_17, %c0_18] : memref<32x32xf32, #tpu.memory_space<vmem>>, vector<32x32xf32>
    %cst_19 = arith.constant dense<0.000000e+00> : vector<32x512xf32>
    %34 = tpu.matmul %33, %32, %cst_19 {dimension_numbers = #tpu.dot_dimension_numbers<[1], [0], [0], [1], [0, 0, 1, 1], [], []>} : vector<32x32xf32>, vector<32x512xf32>, vector<32x512xf32> -> vector<32x512xf32>
    %c0_20 = arith.constant 0 : index
    %c0_21 = arith.constant 0 : index
    %35 = vector.load %arg7[%c0_20, %c0_21] : memref<64x32xf32, #tpu.memory_space<vmem>>, vector<64x32xf32>
    %c0_22 = arith.constant 0 : index
    %c0_23 = arith.constant 0 : index
    %c0_24 = arith.constant 0 : index
    %36 = vector.load %arg2[%c0_22, %c0_23, %c0_24] : memref<2x8x32xf32, #tpu.memory_space<vmem>>, vector<1x8x32xf32>
    %37 = vector.shape_cast %36 : vector<1x8x32xf32> to vector<8x32xf32>
    %cst_25 = arith.constant dense<0.000000e+00> : vector<64x8xf32>
    %38 = tpu.matmul %35, %37, %cst_25 {dimension_numbers = #tpu.dot_dimension_numbers<[1], [1], [0], [0], [0, 0, 1, 0], [], []>} : vector<64x32xf32>, vector<8x32xf32>, vector<64x8xf32> -> vector<64x8xf32>
    %39 = vector.extract_strided_slice %38 {offsets = [0, 0], sizes = [32, 8], strides = [1, 1]} : vector<64x8xf32> to vector<32x8xf32>
    %40 = vector.extract_strided_slice %38 {offsets = [32, 0], sizes = [32, 8], strides = [1, 1]} : vector<64x8xf32> to vector<32x8xf32>
    %41 = vector.extract_strided_slice %34 {offsets = [0, 0], sizes = [32, 256], strides = [1, 1]} : vector<32x512xf32> to vector<32x256xf32>
    %cst_26 = arith.constant dense<0.000000e+00> : vector<8x256xf32>
    %42 = tpu.matmul %39, %41, %cst_26 {dimension_numbers = #tpu.dot_dimension_numbers<[0], [0], [1], [1], [0, 1, 1, 1], [], []>} : vector<32x8xf32>, vector<32x256xf32>, vector<8x256xf32> -> vector<8x256xf32>
    %cst_27 = arith.constant 0.176776692 : f32
    %43 = vector.broadcast %cst_27 : f32 to vector<8x256xf32>
    %44 = arith.mulf %42, %43 : vector<8x256xf32>
    %cst_28 = arith.constant dense<0xFF800000> : vector<256xf32>
    %45 = vector.multi_reduction <maximumf>, %44, %cst_28 [0] : vector<8x256xf32> to vector<256xf32>
    %46 = vector.shape_cast %45 : vector<256xf32> to vector<1x256xf32>
    %47 = vector.broadcast %46 : vector<1x256xf32> to vector<8x256xf32>
    %48 = arith.subf %44, %47 : vector<8x256xf32>
    %49 = math.exp %48 : vector<8x256xf32>
    %cst_29 = arith.constant dense<0.000000e+00> : vector<256xf32>
    %50 = vector.multi_reduction <add>, %49, %cst_29 [0] : vector<8x256xf32> to vector<256xf32>
    %51 = vector.shape_cast %50 : vector<256xf32> to vector<1x256xf32>
    %52 = tpu.reciprocal %51 {approx = true} : vector<1x256xf32> -> vector<1x256xf32>
    %53 = vector.broadcast %52 : vector<1x256xf32> to vector<8x256xf32>
    %54 = arith.mulf %49, %53 : vector<8x256xf32>
    %cst_30 = arith.constant dense<0.000000e+00> : vector<32x256xf32>
    %55 = tpu.matmul %40, %54, %cst_30 {dimension_numbers = #tpu.dot_dimension_numbers<[1], [0], [0], [1], [0, 0, 1, 1], [], []>} : vector<32x8xf32>, vector<8x256xf32>, vector<32x256xf32> -> vector<32x256xf32>
    %c0_31 = arith.constant 0 : index
    %c0_32 = arith.constant 0 : index
    %56 = vector.load %arg7[%c0_31, %c0_32] : memref<64x32xf32, #tpu.memory_space<vmem>>, vector<64x32xf32>
    %c1_33 = arith.constant 1 : index
    %c0_34 = arith.constant 0 : index
    %c0_35 = arith.constant 0 : index
    %57 = vector.load %arg2[%c1_33, %c0_34, %c0_35] : memref<2x8x32xf32, #tpu.memory_space<vmem>>, vector<1x8x32xf32>
    %58 = vector.shape_cast %57 : vector<1x8x32xf32> to vector<8x32xf32>
    %cst_36 = arith.constant dense<0.000000e+00> : vector<64x8xf32>
    %59 = tpu.matmul %56, %58, %cst_36 {dimension_numbers = #tpu.dot_dimension_numbers<[1], [1], [0], [0], [0, 0, 1, 0], [], []>} : vector<64x32xf32>, vector<8x32xf32>, vector<64x8xf32> -> vector<64x8xf32>
    %60 = vector.extract_strided_slice %59 {offsets = [0, 0], sizes = [32, 8], strides = [1, 1]} : vector<64x8xf32> to vector<32x8xf32>
    %61 = vector.extract_strided_slice %59 {offsets = [32, 0], sizes = [32, 8], strides = [1, 1]} : vector<64x8xf32> to vector<32x8xf32>
    %62 = vector.extract_strided_slice %34 {offsets = [0, 256], sizes = [32, 256], strides = [1, 1]} : vector<32x512xf32> to vector<32x256xf32>
    %cst_37 = arith.constant dense<0.000000e+00> : vector<8x256xf32>
    %63 = tpu.matmul %60, %62, %cst_37 {dimension_numbers = #tpu.dot_dimension_numbers<[0], [0], [1], [1], [0, 1, 1, 1], [], []>} : vector<32x8xf32>, vector<32x256xf32>, vector<8x256xf32> -> vector<8x256xf32>
    %cst_38 = arith.constant 0.176776692 : f32
    %64 = vector.broadcast %cst_38 : f32 to vector<8x256xf32>
    %65 = arith.mulf %63, %64 : vector<8x256xf32>
    %cst_39 = arith.constant dense<0xFF800000> : vector<256xf32>
    %66 = vector.multi_reduction <maximumf>, %65, %cst_39 [0] : vector<8x256xf32> to vector<256xf32>
    %67 = vector.shape_cast %66 : vector<256xf32> to vector<1x256xf32>
    %68 = vector.broadcast %67 : vector<1x256xf32> to vector<8x256xf32>
    %69 = arith.subf %65, %68 : vector<8x256xf32>
    %70 = math.exp %69 : vector<8x256xf32>
    %cst_40 = arith.constant dense<0.000000e+00> : vector<256xf32>
    %71 = vector.multi_reduction <add>, %70, %cst_40 [0] : vector<8x256xf32> to vector<256xf32>
    %72 = vector.shape_cast %71 : vector<256xf32> to vector<1x256xf32>
    %73 = tpu.reciprocal %72 {approx = true} : vector<1x256xf32> -> vector<1x256xf32>
    %74 = vector.broadcast %73 : vector<1x256xf32> to vector<8x256xf32>
    %75 = arith.mulf %70, %74 : vector<8x256xf32>
    %cst_41 = arith.constant dense<0.000000e+00> : vector<32x256xf32>
    %76 = tpu.matmul %61, %75, %cst_41 {dimension_numbers = #tpu.dot_dimension_numbers<[1], [0], [0], [1], [0, 0, 1, 1], [], []>} : vector<32x8xf32>, vector<8x256xf32>, vector<32x256xf32> -> vector<32x256xf32>
    %77 = tpu.concatenate %55, %76 in 1 : vector<32x256xf32>, vector<32x256xf32> -> vector<32x512xf32>
    %c0_42 = arith.constant 0 : index
    %c0_43 = arith.constant 0 : index
    %78 = vector.load %arg8[%c0_42, %c0_43] : memref<4x32xf32, #tpu.memory_space<vmem>>, vector<4x32xf32>
    %cst_44 = arith.constant dense<0.000000e+00> : vector<4x512xf32>
    %79 = tpu.matmul %78, %32, %cst_44 {dimension_numbers = #tpu.dot_dimension_numbers<[1], [0], [0], [1], [0, 0, 1, 1], [], []>} : vector<4x32xf32>, vector<32x512xf32>, vector<4x512xf32> -> vector<4x512xf32>
    %c0_45 = arith.constant 0 : index
    %c0_46 = arith.constant 0 : index
    %80 = vector.load %arg9[%c0_45, %c0_46] : memref<4x32xf32, #tpu.memory_space<vmem>>, vector<4x32xf32>
    %cst_47 = arith.constant dense<0.000000e+00> : vector<4x512xf32>
    %81 = tpu.matmul %80, %77, %cst_47 {dimension_numbers = #tpu.dot_dimension_numbers<[1], [0], [0], [1], [0, 0, 1, 1], [], []>} : vector<4x32xf32>, vector<32x512xf32>, vector<4x512xf32> -> vector<4x512xf32>
    %82 = arith.addf %79, %81 : vector<4x512xf32>
    %c0_48 = arith.constant 0 : index
    %c0_49 = arith.constant 0 : index
    %83 = vector.load %arg10[%c0_48, %c0_49] : memref<4x1xf32, #tpu.memory_space<vmem>>, vector<4x1xf32>
    %84 = vector.broadcast %83 : vector<4x1xf32> to vector<4x512xf32>
    %85 = arith.addf %82, %84 : vector<4x512xf32>
    %86 = vector.extract_strided_slice %85 {offsets = [0, 0], sizes = [4, 256], strides = [1, 1]} : vector<4x512xf32> to vector<4x256xf32>
    %c0_50 = arith.constant 0 : index
    %c0_51 = arith.constant 0 : index
    %c0_52 = arith.constant 0 : index
    %87 = vector.load %arg11[%c0_50, %c0_51, %c0_52] : memref<2x4x256xf32, #tpu.memory_space<vmem>>, vector<1x4x256xf32>
    %88 = vector.shape_cast %87 : vector<1x4x256xf32> to vector<4x256xf32>
    %89 = vector.shape_cast %86 : vector<4x256xf32> to vector<1x4x256xf32>
    tpu.vector_store %arg11[%c0_50, %c0_51, %c0_52], %89 {strides = array<i32>} : memref<2x4x256xf32, #tpu.memory_space<vmem>>, vector<1x4x256xf32>,
    %90 = vector.extract_strided_slice %85 {offsets = [0, 256], sizes = [4, 256], strides = [1, 1]} : vector<4x512xf32> to vector<4x256xf32>
    %c1_53 = arith.constant 1 : index
    %c0_54 = arith.constant 0 : index
    %c0_55 = arith.constant 0 : index
    %91 = vector.load %arg11[%c1_53, %c0_54, %c0_55] : memref<2x4x256xf32, #tpu.memory_space<vmem>>, vector<1x4x256xf32>
    %92 = vector.shape_cast %91 : vector<1x4x256xf32> to vector<4x256xf32>
    %93 = vector.shape_cast %90 : vector<4x256xf32> to vector<1x4x256xf32>
    tpu.vector_store %arg11[%c1_53, %c0_54, %c0_55], %93 {strides = array<i32>} : memref<2x4x256xf32, #tpu.memory_space<vmem>>, vector<1x4x256xf32>,
    return
  }
}

</mosaic_0001>

<llo_original>
// kernel: latent_diffusion_forward.1
$region0: #{latent_diffusion_forward.1}
  #allocation0 [shape = 'u32[]', space=smem, size = 0x4, offset = 0x4, fixed_abs, tag = 'smem constant byte address 0x4 - core index']
  #allocation1 [shape = 'u32[144,128]{1,0:T(1,128)}', space=vmem, size = 0x12000, scoped, tag = 'internal scratch']
  %s0 = inlined_call_operand.vmem [shape: f32[2,4,256], index: 0, kind: input, shape index: {}]
  %s1 = inlined_call_operand.vmem [shape: f32[32,2], index: 1, kind: input, shape index: {}]
  %s2 = inlined_call_operand.vmem [shape: f32[2,8,32], index: 2, kind: input, shape index: {}]
  %s3 = inlined_call_operand.vmem [shape: f32[32,4], index: 3, kind: input, shape index: {}]
  %s4 = inlined_call_operand.vmem [shape: f32[32,1], index: 4, kind: input, shape index: {}]
  %s5 = inlined_call_operand.vmem [shape: f32[32,32], index: 5, kind: input, shape index: {}]
  %s6 = inlined_call_operand.vmem [shape: f32[32,32], index: 6, kind: input, shape index: {}]
  %s7 = inlined_call_operand.vmem [shape: f32[64,32], index: 7, kind: input, shape index: {}]
  %s8 = inlined_call_operand.vmem [shape: f32[4,32], index: 8, kind: input, shape index: {}]
  %s9 = inlined_call_operand.vmem [shape: f32[4,32], index: 9, kind: input, shape index: {}]
  %s10 = inlined_call_operand.vmem [shape: f32[4,1], index: 10, kind: input, shape index: {}]
  %s11 = inlined_call_operand.vmem [shape: f32[2,4,256], index: 11, kind: output, shape index: {}]
  %s12 = sld [smem:[#allocation0]]
  $region54: #{latent_diffusion_forward.1} parent=0
    _
  %s14 = ssub.s32 1, %s12
  %s15 = scalar_select 0, %s14, %s12
  // Predicated region
  $region2: #{latent_diffusion_forward.1} parent=0 // pred_check
    _
  $region3: #{latent_diffusion_forward.1} parent=0 // pred_check_branch
    %17 = sbr.rel (0) target = $region5
  $region4: #{latent_diffusion_forward.1} parent=0 // pred_region
    _
  $region5: #{latent_diffusion_forward.1} parent=0 // pred_fallthru
    _
  // Predicated region
  $region6: #{latent_diffusion_forward.1} parent=0 // pred_check
    _
  $region7: #{latent_diffusion_forward.1} parent=0 // pred_check_branch
    %19 = sbr.rel (0) target = $region9
  $region8: #{latent_diffusion_forward.1} parent=0 // pred_region
    _
  $region9: #{latent_diffusion_forward.1} parent=0 // pred_fallthru
    _
  // Predicated region
  $region10: #{latent_diffusion_forward.1} parent=0 // pred_check
    _
  $region11: #{latent_diffusion_forward.1} parent=0 // pred_check_branch
    %21 = sbr.rel (0) target = $region13
  $region12: #{latent_diffusion_forward.1} parent=0 // pred_region
    _
  $region13: #{latent_diffusion_forward.1} parent=0 // pred_fallthru
    _
  // Predicated region
  $region14: #{latent_diffusion_forward.1} parent=0 // pred_check
    _
  $region15: #{latent_diffusion_forward.1} parent=0 // pred_check_branch
    %23 = sbr.rel (0) target = $region17
  $region16: #{latent_diffusion_forward.1} parent=0 // pred_region
    _
  $region17: #{latent_diffusion_forward.1} parent=0 // pred_fallthru
    _
  // Predicated region
  $region18: #{latent_diffusion_forward.1} parent=0 // pred_check
    _
  $region19: #{latent_diffusion_forward.1} parent=0 // pred_check_branch
    %25 = sbr.rel (0) target = $region21
  $region20: #{latent_diffusion_forward.1} parent=0 // pred_region
    _
  $region21: #{latent_diffusion_forward.1} parent=0 // pred_fallthru
    _
  // Predicated region
  $region22: #{latent_diffusion_forward.1} parent=0 // pred_check
    _
  $region23: #{latent_diffusion_forward.1} parent=0 // pred_check_branch
    %27 = sbr.rel (0) target = $region25
  $region24: #{latent_diffusion_forward.1} parent=0 // pred_region
    _
  $region25: #{latent_diffusion_forward.1} parent=0 // pred_fallthru
    _
  // Predicated region
  $region26: #{latent_diffusion_forward.1} parent=0 // pred_check
    _
  $region27: #{latent_diffusion_forward.1} parent=0 // pred_check_branch
    %29 = sbr.rel (0) target = $region29
  $region28: #{latent_diffusion_forward.1} parent=0 // pred_region
    _
  $region29: #{latent_diffusion_forward.1} parent=0 // pred_fallthru
    _
  // Predicated region
  $region30: #{latent_diffusion_forward.1} parent=0 // pred_check
    _
  $region31: #{latent_diffusion_forward.1} parent=0 // pred_check_branch
    %31 = sbr.rel (0) target = $region33
  $region32: #{latent_diffusion_forward.1} parent=0 // pred_region
    _
  $region33: #{latent_diffusion_forward.1} parent=0 // pred_fallthru
    _
  // Predicated region
  $region34: #{latent_diffusion_forward.1} parent=0 // pred_check
    _
  $region35: #{latent_diffusion_forward.1} parent=0 // pred_check_branch
    %33 = sbr.rel (0) target = $region37
  $region36: #{latent_diffusion_forward.1} parent=0 // pred_region
    _
  $region37: #{latent_diffusion_forward.1} parent=0 // pred_fallthru
    _
  // Predicated region
  $region38: #{latent_diffusion_forward.1} parent=0 // pred_check
    _
  $region39: #{latent_diffusion_forward.1} parent=0 // pred_check_branch
    %35 = sbr.rel (0) target = $region41
  $region40: #{latent_diffusion_forward.1} parent=0 // pred_region
    _
  $region41: #{latent_diffusion_forward.1} parent=0 // pred_fallthru
    _
  // Predicated region
  $region42: #{latent_diffusion_forward.1} parent=0 // pred_check
    _
  $region43: #{latent_diffusion_forward.1} parent=0 // pred_check_branch
    %37 = sbr.rel (0) target = $region45
  $region44: #{latent_diffusion_forward.1} parent=0 // pred_region
    _
  $region45: #{latent_diffusion_forward.1} parent=0 // pred_fallthru
    _
  %v38 = vld [vmem:[%s5] sm:$0xff]
  %v39 = vld [vmem:[%s5 + $0x8] sm:$0xff]
  %v40 = vld [vmem:[%s5 + $0x10] sm:$0xff]
  %v41 = vld [vmem:[%s5 + $0x18] sm:$0xff]
  %v42 = vld [vmem:[%s1] sm:$0xff]
  %v43 = vld [vmem:[%s1 + $0x8] sm:$0xff]
  %v44 = vld [vmem:[%s1 + $0x10] sm:$0xff]
  %v45 = vld [vmem:[%s1 + $0x18] sm:$0xff]
  %vm46 = vcmask 261120
  %v48 = vsel %vm46, %v38, 0
  %v51 = vsel %vm46, %v39, 0
  %v54 = vsel %vm46, %v40, 0
  %v57 = vsel %vm46, %v41, 0
  %59 = vmatprep.subr.mxu0 0.0
  %60 = vmatpush1.msra.mxu0 %v42
  %61 = vmatprep.subr.mxu0 0.0
  %62 = vmatpush1.msra.mxu0 %v43
  %63 = vmatprep.subr.mxu0 0.0
  %64 = vmatpush1.msra.mxu0 %v44
  %65 = vmatprep.subr.mxu0 0.0
  %66 = vmatpush1.msra.mxu0 %v45
  %67 = vmatprep.subr.mxu0 0.0
  %68 = vmatpush1.msra.mxu0 0.0
  %69 = vmatprep.subr.mxu0 0.0
  %70 = vmatpush1.msra.mxu0 0.0
  %71 = vmatprep.subr.mxu0 0.0
  %72 = vmatpush1.msra.mxu0 0.0
  %73 = vmatprep.subr.mxu0 0.0
  %74 = vmatpush1.msra.mxu0 0.0
  %75 = vmatprep.subr.mxu0 0.0
  %76 = vmatpush1.msra.mxu0 0.0
  %77 = vmatprep.subr.mxu0 0.0
  %78 = vmatpush1.msra.mxu0 0.0
  %79 = vmatprep.subr.mxu0 0.0
  %80 = vmatpush1.msra.mxu0 0.0
  %81 = vmatprep.subr.mxu0 0.0
  %82 = vmatpush1.msra.mxu0 0.0
  %83 = vmatprep.subr.mxu0 0.0
  %84 = vmatpush1.msra.mxu0 0.0
  %85 = vmatprep.subr.mxu0 0.0
  %86 = vmatpush1.msra.mxu0 0.0
  %87 = vmatprep.subr.mxu0 0.0
  %88 = vmatpush1.msra.mxu0 0.0
  %89 = vmatprep.subr.mxu0 0.0
  %90 = vmatpush1.msra.mxu0 0.0
  %91 = vmatprep.subr.mxu0 0.0
  %92 = vmatpush1.msra.mxu0 0.0
  %93 = vmatprep.subr.mxu0 0.0
  %94 = vmatpush1.msra.mxu0 0.0
  %95 = vmatprep.subr.mxu0 0.0
  %96 = vmatpush1.msra.mxu0 0.0
  %97 = vmatprep.subr.mxu0 0.0
  %98 = vmatpush1.msra.mxu0 0.0
  %99 = vmatprep.subr.mxu0 0.0
  %100 = vmatpush1.msra.mxu0 0.0
  %101 = vmatprep.subr.mxu0 0.0
  %102 = vmatpush1.msra.mxu0 0.0
  %103 = vmatprep.subr.mxu0 0.0
  %104 = vmatpush1.msra.mxu0 0.0
  %105 = vmatprep.subr.mxu0 0.0
  %106 = vmatpush1.msra.mxu0 0.0
  %107 = vmatprep.subr.mxu0 0.0
  %108 = vmatpush1.msra.mxu0 0.0
  %109 = vmatprep.subr.mxu0 0.0
  %110 = vmatpush1.msra.mxu0 0.0
  %111 = vmatprep.subr.mxu0 0.0
  %112 = vmatpush1.msra.mxu0 0.0
  %113 = vmatprep.subr.mxu0 0.0
  %114 = vmatpush1.msra.mxu0 0.0
  %115 = vmatprep.subr.mxu0 0.0
  %116 = vmatpush1.msra.mxu0 0.0
  %117 = vmatprep.subr.mxu0 0.0
  %118 = vmatpush1.msra.mxu0 0.0
  %119 = vmatprep.subr.mxu0 0.0
  %120 = vmatpush1.msra.mxu0 0.0
  %121 = vmatprep.subr.mxu0 0.0
  %122 = vmatpush1.msra.mxu0 0.0
  %123 = vmatprep.mubr.f32.mxu0 0.0
  %124 = vmatmul.mubr.f32.gmra.mrb[0].mxu0 %v48
  %v125 = vpop.f32.mrb[0].mxu0
  %v126 = vadd.f32 0.0, %v125
  %v127 = vpop.f32.mrb[0].mxu0
  %128 = vmatprep.mubr.f32.mxu0 0.0
  %129 = vmatmul.mubr.f32.gmra.mrb[0].mxu0 %v51
  %v130 = vpop.f32.mrb[0].mxu0
  %v131 = vadd.f32 0.0, %v130
  %v132 = vpop.f32.mrb[0].mxu0
  %133 = vmatprep.mubr.f32.mxu0 0.0
  %134 = vmatmul.mubr.f32.gmra.mrb[0].mxu0 %v54
  %v135 = vpop.f32.mrb[0].mxu0
  %v136 = vadd.f32 0.0, %v135
  %v137 = vpop.f32.mrb[0].mxu0
  %138 = vmatprep.mubr.f32.mxu0 0.0
  %139 = vmatmul.mubr.f32.gmra.mrb[0].mxu0 %v57
  %v140 = vpop.f32.mrb[0].mxu0
  %v141 = vadd.f32 0.0, %v140
  %v142 = vpop.f32.mrb[0].mxu0
  %143 = vdwg.mxu0
  %v144 = vsub.f32 0.0, %v126
  %v145 = vsub.f32 0.0, %v131
  %v146 = vsub.f32 0.0, %v136
  %v147 = vsub.f32 0.0, %v141
  %v148 = vmul.f32 %v144, 1.442695
  %v149 = vpow.pop %v148
  %v150 = vmul.f32 %v145, 1.442695
  %v151 = vpow.pop %v150
  %v152 = vmul.f32 %v146, 1.442695
  %v153 = vpow.pop %v152
  %v154 = vmul.f32 %v147, 1.442695
  %v155 = vpow.pop %v154
  %v156 = vadd.f32 %v149, 1.0
  %v157 = vadd.f32 %v151, 1.0
  %v158 = vadd.f32 %v153, 1.0
  %v159 = vadd.f32 %v155, 1.0
  %v160 = vrcp.pop %v156
  %v161 = vmul.f32 %v126, %v160
  %v162 = vrcp.pop %v157
  %v163 = vmul.f32 %v131, %v162
  %v164 = vrcp.pop %v158
  %v165 = vmul.f32 %v136, %v164
  %v166 = vrcp.pop %v159
  %v167 = vmul.f32 %v141, %v166
  %v168 = vld [vmem:[%s4] sm:$0xff]
  %v169 = vld [vmem:[%s4 + $0x8] sm:$0xff]
  %v170 = vld [vmem:[%s4 + $0x10] sm:$0xff]
  %v171 = vld [vmem:[%s4 + $0x18] sm:$0xff]
  %173 = vset.pattern.permute.xlu0 0
  %174 = vperm.xlu0 %173, %v168
  %v175 = vpop.permute.xlu0 %174
  %178 = vset.pattern.permute.xlu0 0
  %179 = vperm.xlu0 %178, %v169
  %v180 = vpop.permute.xlu0 %179
  %183 = vset.pattern.permute.xlu0 0
  %184 = vperm.xlu0 %183, %v170
  %v185 = vpop.permute.xlu0 %184
  %188 = vset.pattern.permute.xlu0 0
  %189 = vperm.xlu0 %188, %v171
  %v190 = vpop.permute.xlu0 %189
  %v192 = vadd.f32 %v161, %v175
  %v193 = vadd.f32 %v163, %v180
  %v194 = vadd.f32 %v165, %v185
  %v195 = vadd.f32 %v167, %v190
  %v196 = vld [vmem:[%s0] sm:$0xff]
  %s197 = scalar_lea.vmem %s0, 8
  %v198 = vld [vmem:[%s197] sm:$0xff]
  %v200 = vcombine.high %v196, %v196
  %v202 = vcombine.high %v198, %v198
  %204 = vset.pattern.permute.xlu0 0
  %205 = vperm.xlu0 %204, %v192
  %v206 = vpop.permute.xlu0 %205
  %209 = vset.pattern.permute.xlu0 0
  %210 = vperm.xlu0 %209, %v193
  %v211 = vpop.permute.xlu0 %210
  %214 = vset.pattern.permute.xlu0 0
  %215 = vperm.xlu0 %214, %v194
  %v216 = vpop.permute.xlu0 %215
  %219 = vset.pattern.permute.xlu0 0
  %220 = vperm.xlu0 %219, %v195
  %v221 = vpop.permute.xlu0 %220
  %223 = vset.pattern.permute.xlu0 1
  %224 = vperm.xlu0 %223, %v192
  %v225 = vpop.permute.xlu0 %224
  %227 = vset.pattern.permute.xlu0 1
  %228 = vperm.xlu0 %227, %v193
  %v229 = vpop.permute.xlu0 %228
  %231 = vset.pattern.permute.xlu0 1
  %232 = vperm.xlu0 %231, %v194
  %v233 = vpop.permute.xlu0 %232
  %235 = vset.pattern.permute.xlu0 1
  %236 = vperm.xlu0 %235, %v195
  %v237 = vpop.permute.xlu0 %236
  %v239 = vld [vmem:[%s3] sm:$0xff]
  %v240 = vld [vmem:[%s3 + $0x8] sm:$0xff]
  %v241 = vld [vmem:[%s3 + $0x10] sm:$0xff]
  %v242 = vld [vmem:[%s3 + $0x18] sm:$0xff]
  %vm243 = vcmask 31744
  %v245 = vsel %vm243, %v239, 0
  %v248 = vsel %vm243, %v240, 0
  %v251 = vsel %vm243, %v241, 0
  %v254 = vsel %vm243, %v242, 0
  %vm256 = vcmask 1043456
  %v257 = vsel %vm256, %v196, 0
  %v259 = vsel %vm256, %v200, 0
  %v261 = vsel %vm256, %v198, 0
  %v263 = vsel %vm256, %v202, 0
  %265 = vmatprep.subr.mxu0 %v259
  %266 = vmatpush1.msra.mxu0 %v257
  %267 = vmatprep.subr.mxu0 0.0
  %268 = vmatpush1.msra.mxu0 0.0
  %269 = vmatprep.subr.mxu0 0.0
  %270 = vmatpush1.msra.mxu0 0.0
  %271 = vmatprep.subr.mxu0 0.0
  %272 = vmatpush1.msra.mxu0 0.0
  %273 = vmatprep.subr.mxu0 0.0
  %274 = vmatpush1.msra.mxu0 0.0
  %275 = vmatprep.subr.mxu0 0.0
  %276 = vmatpush1.msra.mxu0 0.0
  %277 = vmatprep.subr.mxu0 0.0
  %278 = vmatpush1.msra.mxu0 0.0
  %279 = vmatprep.subr.mxu0 0.0
  %280 = vmatpush1.msra.mxu0 0.0
  %281 = vmatprep.subr.mxu0 0.0
  %282 = vmatpush1.msra.mxu0 0.0
  %283 = vmatprep.subr.mxu0 0.0
  %284 = vmatpush1.msra.mxu0 0.0
  %285 = vmatprep.subr.mxu0 0.0
  %286 = vmatpush1.msra.mxu0 0.0
  %287 = vmatprep.subr.mxu0 0.0
  %288 = vmatpush1.msra.mxu0 0.0
  %289 = vmatprep.subr.mxu0 0.0
  %290 = vmatpush1.msra.mxu0 0.0
  %291 = vmatprep.subr.mxu0 0.0
  %292 = vmatpush1.msra.mxu0 0.0
  %293 = vmatprep.subr.mxu0 0.0
  %294 = vmatpush1.msra.mxu0 0.0
  %295 = vmatprep.subr.mxu0 0.0
  %296 = vmatpush1.msra.mxu0 0.0
  %297 = vmatprep.subr.mxu0 0.0
  %298 = vmatpush1.msra.mxu0 0.0
  %299 = vmatprep.subr.mxu0 0.0
  %300 = vmatpush1.msra.mxu0 0.0
  %301 = vmatprep.subr.mxu0 0.0
  %302 = vmatpush1.msra.mxu0 0.0
  %303 = vmatprep.subr.mxu0 0.0
  %304 = vmatpush1.msra.mxu0 0.0
  %305 = vmatprep.subr.mxu0 0.0
  %306 = vmatpush1.msra.mxu0 0.0
  %307 = vmatprep.subr.mxu0 0.0
  %308 = vmatpush1.msra.mxu0 0.0
  %309 = vmatprep.subr.mxu0 0.0
  %310 = vmatpush1.msra.mxu0 0.0
  %311 = vmatprep.subr.mxu0 0.0
  %312 = vmatpush1.msra.mxu0 0.0
  %313 = vmatprep.subr.mxu0 0.0
  %314 = vmatpush1.msra.mxu0 0.0
  %315 = vmatprep.subr.mxu0 0.0
  %316 = vmatpush1.msra.mxu0 0.0
  %317 = vmatprep.subr.mxu0 0.0
  %318 = vmatpush1.msra.mxu0 0.0
  %319 = vmatprep.subr.mxu0 0.0
  %320 = vmatpush1.msra.mxu0 0.0
  %321 = vmatprep.subr.mxu0 0.0
  %322 = vmatpush1.msra.mxu0 0.0
  %323 = vmatprep.subr.mxu0 0.0
  %324 = vmatpush1.msra.mxu0 0.0
  %325 = vmatprep.subr.mxu0 0.0
  %326 = vmatpush1.msra.mxu0 0.0
  %327 = vmatprep.subr.mxu0 0.0
  %328 = vmatpush1.msra.mxu0 0.0
  %329 = vmatprep.mubr.f32.mxu0 0.0
  %330 = vmatmul.mubr.f32.gmra.mrb[0].mxu0 %v245
  %v331 = vpop.f32.mrb[0].mxu0
  %v332 = vadd.f32 %v206, %v331
  %v333 = vpop.f32.mrb[0].mxu0
  %v334 = vadd.f32 %v206, %v333
  %335 = vmatprep.mubr.f32.mxu0 0.0
  %336 = vmatmul.mubr.f32.gmra.mrb[0].mxu0 %v248
  %v337 = vpop.f32.mrb[0].mxu0
  %v338 = vadd.f32 %v211, %v337
  %v339 = vpop.f32.mrb[0].mxu0
  %v340 = vadd.f32 %v211, %v339
  %341 = vmatprep.mubr.f32.mxu0 0.0
  %342 = vmatmul.mubr.f32.gmra.mrb[0].mxu0 %v251
  %v343 = vpop.f32.mrb[0].mxu0
  %v344 = vadd.f32 %v216, %v343
  %v345 = vpop.f32.mrb[0].mxu0
  %v346 = vadd.f32 %v216, %v345
  %347 = vmatprep.mubr.f32.mxu0 0.0
  %348 = vmatmul.mubr.f32.gmra.mrb[0].mxu0 %v254
  %v349 = vpop.f32.mrb[0].mxu0
  %v350 = vadd.f32 %v221, %v349
  %v351 = vpop.f32.mrb[0].mxu0
  %v352 = vadd.f32 %v221, %v351
  %353 = vdwg.mxu0
  %354 = vmatprep.subr.mxu0 %v263
  %355 = vmatpush1.msra.mxu0 %v261
  %356 = vmatprep.subr.mxu0 0.0
  %357 = vmatpush1.msra.mxu0 0.0
  %358 = vmatprep.subr.mxu0 0.0
  %359 = vmatpush1.msra.mxu0 0.0
  %360 = vmatprep.subr.mxu0 0.0
  %361 = vmatpush1.msra.mxu0 0.0
  %362 = vmatprep.subr.mxu0 0.0
  %363 = vmatpush1.msra.mxu0 0.0
  %364 = vmatprep.subr.mxu0 0.0
  %365 = vmatpush1.msra.mxu0 0.0
  %366 = vmatprep.subr.mxu0 0.0
  %367 = vmatpush1.msra.mxu0 0.0
  %368 = vmatprep.subr.mxu0 0.0
  %369 = vmatpush1.msra.mxu0 0.0
  %370 = vmatprep.subr.mxu0 0.0
  %371 = vmatpush1.msra.mxu0 0.0
  %372 = vmatprep.subr.mxu0 0.0
  %373 = vmatpush1.msra.mxu0 0.0
  %374 = vmatprep.subr.mxu0 0.0
  %375 = vmatpush1.msra.mxu0 0.0
  %376 = vmatprep.subr.mxu0 0.0
  %377 = vmatpush1.msra.mxu0 0.0
  %378 = vmatprep.subr.mxu0 0.0
  %379 = vmatpush1.msra.mxu0 0.0
  %380 = vmatprep.subr.mxu0 0.0
  %381 = vmatpush1.msra.mxu0 0.0
  %382 = vmatprep.subr.mxu0 0.0
  %383 = vmatpush1.msra.mxu0 0.0
  %384 = vmatprep.subr.mxu0 0.0
  %385 = vmatpush1.msra.mxu0 0.0
  %386 = vmatprep.subr.mxu0 0.0
  %387 = vmatpush1.msra.mxu0 0.0
  %388 = vmatprep.subr.mxu0 0.0
  %389 = vmatpush1.msra.mxu0 0.0
  %390 = vmatprep.subr.mxu0 0.0
  %391 = vmatpush1.msra.mxu0 0.0
  %392 = vmatprep.subr.mxu0 0.0
  %393 = vmatpush1.msra.mxu0 0.0
  %394 = vmatprep.subr.mxu0 0.0
  %395 = vmatpush1.msra.mxu0 0.0
  %396 = vmatprep.subr.mxu0 0.0
  %397 = vmatpush1.msra.mxu0 0.0
  %398 = vmatprep.subr.mxu0 0.0
  %399 = vmatpush1.msra.mxu0 0.0
  %400 = vmatprep.subr.mxu0 0.0
  %401 = vmatpush1.msra.mxu0 0.0
  %402 = vmatprep.subr.mxu0 0.0
  %403 = vmatpush1.msra.mxu0 0.0
  %404 = vmatprep.subr.mxu0 0.0
  %405 = vmatpush1.msra.mxu0 0.0
  %406 = vmatprep.subr.mxu0 0.0
  %407 = vmatpush1.msra.mxu0 0.0
  %408 = vmatprep.subr.mxu0 0.0
  %409 = vmatpush1.msra.mxu0 0.0
  %410 = vmatprep.subr.mxu0 0.0
  %411 = vmatpush1.msra.mxu0 0.0
  %412 = vmatprep.subr.mxu0 0.0
  %413 = vmatpush1.msra.mxu0 0.0
  %414 = vmatprep.subr.mxu0 0.0
  %415 = vmatpush1.msra.mxu0 0.0
  %416 = vmatprep.subr.mxu0 0.0
  %417 = vmatpush1.msra.mxu0 0.0
  %418 = vmatprep.mubr.f32.mxu0 0.0
  %419 = vmatmul.mubr.f32.gmra.mrb[0].mxu0 %v245
  %v420 = vpop.f32.mrb[0].mxu0
  %v421 = vadd.f32 %v225, %v420
  %v422 = vpop.f32.mrb[0].mxu0
  %v423 = vadd.f32 %v225, %v422
  %424 = vmatprep.mubr.f32.mxu0 0.0
  %425 = vmatmul.mubr.f32.gmra.mrb[0].mxu0 %v248
  %v426 = vpop.f32.mrb[0].mxu0
  %v427 = vadd.f32 %v229, %v426
  %v428 = vpop.f32.mrb[0].mxu0
  %v429 = vadd.f32 %v229, %v428
  %430 = vmatprep.mubr.f32.mxu0 0.0
  %431 = vmatmul.mubr.f32.gmra.mrb[0].mxu0 %v251
  %v432 = vpop.f32.mrb[0].mxu0
  %v433 = vadd.f32 %v233, %v432
  %v434 = vpop.f32.mrb[0].mxu0
  %v435 = vadd.f32 %v233, %v434
  %436 = vmatprep.mubr.f32.mxu0 0.0
  %437 = vmatmul.mubr.f32.gmra.mrb[0].mxu0 %v254
  %v438 = vpop.f32.mrb[0].mxu0
  %v439 = vadd.f32 %v237, %v438
  %v440 = vpop.f32.mrb[0].mxu0
  %v441 = vadd.f32 %v237, %v440
  %442 = vdwg.mxu0
  %v443 = vsub.f32 0.0, %v332
  %v444 = vsub.f32 0.0, %v334
  %v445 = vsub.f32 0.0, %v421
  %v446 = vsub.f32 0.0, %v423
  %v447 = vsub.f32 0.0, %v338
  %v448 = vsub.f32 0.0, %v340
  %v449 = vsub.f32 0.0, %v427
  %v450 = vsub.f32 0.0, %v429
  %v451 = vsub.f32 0.0, %v344
  %v452 = vsub.f32 0.0, %v346
  %v453 = vsub.f32 0.0, %v433
  %v454 = vsub.f32 0.0, %v435
  %v455 = vsub.f32 0.0, %v350
  %v456 = vsub.f32 0.0, %v352
  %v457 = vsub.f32 0.0, %v439
  %v458 = vsub.f32 0.0, %v441
  %v459 = vmul.f32 %v443, 1.442695
  %v460 = vpow.pop %v459
  %v461 = vmul.f32 %v444, 1.442695
  %v462 = vpow.pop %v461
  %v463 = vmul.f32 %v445, 1.442695
  %v464 = vpow.pop %v463
  %v465 = vmul.f32 %v446, 1.442695
  %v466 = vpow.pop %v465
  %v467 = vmul.f32 %v447, 1.442695
  %v468 = vpow.pop %v467
  %v469 = vmul.f32 %v448, 1.442695
  %v470 = vpow.pop %v469
  %v471 = vmul.f32 %v449, 1.442695
  %v472 = vpow.pop %v471
  %v473 = vmul.f32 %v450, 1.442695
  %v474 = vpow.pop %v473
  %v475 = vmul.f32 %v451, 1.442695
  %v476 = vpow.pop %v475
  %v477 = vmul.f32 %v452, 1.442695
  %v478 = vpow.pop %v477
  %v479 = vmul.f32 %v453, 1.442695
  %v480 = vpow.pop %v479
  %v481 = vmul.f32 %v454, 1.442695
  %v482 = vpow.pop %v481
  %v483 = vmul.f32 %v455, 1.442695
  %v484 = vpow.pop %v483
  %v485 = vmul.f32 %v456, 1.442695
  %v486 = vpow.pop %v485
  %v487 = vmul.f32 %v457, 1.442695
  %v488 = vpow.pop %v487
  %v489 = vmul.f32 %v458, 1.442695
  %v490 = vpow.pop %v489
  %v491 = vadd.f32 %v460, 1.0
  %v492 = vadd.f32 %v462, 1.0
  %v493 = vadd.f32 %v464, 1.0
  %v494 = vadd.f32 %v466, 1.0
  %v495 = vadd.f32 %v468, 1.0
  %v496 = vadd.f32 %v470, 1.0
  %v497 = vadd.f32 %v472, 1.0
  %v498 = vadd.f32 %v474, 1.0
  %v499 = vadd.f32 %v476, 1.0
  %v500 = vadd.f32 %v478, 1.0
  %v501 = vadd.f32 %v480, 1.0
  %v502 = vadd.f32 %v482, 1.0
  %v503 = vadd.f32 %v484, 1.0
  %v504 = vadd.f32 %v486, 1.0
  %v505 = vadd.f32 %v488, 1.0
  %v506 = vadd.f32 %v490, 1.0
  %v507 = vrcp.pop %v491
  %v508 = vmul.f32 %v332, %v507
  %v509 = vrcp.pop %v492
  %v510 = vmul.f32 %v334, %v509
  %v511 = vrcp.pop %v493
  %v512 = vmul.f32 %v421, %v511
  %v513 = vrcp.pop %v494
  %v514 = vmul.f32 %v423, %v513
  %v515 = vrcp.pop %v495
  %v516 = vmul.f32 %v338, %v515
  %v517 = vrcp.pop %v496
  %v518 = vmul.f32 %v340, %v517
  %v519 = vrcp.pop %v497
  %v520 = vmul.f32 %v427, %v519
  %v521 = vrcp.pop %v498
  %v522 = vmul.f32 %v429, %v521
  %v523 = vrcp.pop %v499
  %v524 = vmul.f32 %v344, %v523
  %v525 = vrcp.pop %v500
  %v526 = vmul.f32 %v346, %v525
  %v527 = vrcp.pop %v501
  %v528 = vmul.f32 %v433, %v527
  %v529 = vrcp.pop %v502
  %v530 = vmul.f32 %v435, %v529
  %v531 = vrcp.pop %v503
  %v532 = vmul.f32 %v350, %v531
  %v533 = vrcp.pop %v504
  %v534 = vmul.f32 %v352, %v533
  %v535 = vrcp.pop %v505
  %v536 = vmul.f32 %v439, %v535
  %v537 = vrcp.pop %v506
  %v538 = vmul.f32 %v441, %v537
  %v539 = vld [vmem:[%s6] sm:$0xff]
  %v540 = vld [vmem:[%s6 + $0x8] sm:$0xff]
  %v541 = vld [vmem:[%s6 + $0x10] sm:$0xff]
  %v542 = vld [vmem:[%s6 + $0x18] sm:$0xff]
  %v544 = vsel %vm46, %v539, 0
  %v547 = vsel %vm46, %v540, 0
  %v550 = vsel %vm46, %v541, 0
  %v553 = vsel %vm46, %v542, 0
  %555 = vmatprep.subr.mxu0 %v510
  %556 = vmatpush1.msra.mxu0 %v508
  %557 = vmatprep.subr.mxu0 %v518
  %558 = vmatpush1.msra.mxu0 %v516
  %559 = vmatprep.subr.mxu0 %v526
  %560 = vmatpush1.msra.mxu0 %v524
  %561 = vmatprep.subr.mxu0 %v534
  %562 = vmatpush1.msra.mxu0 %v532
  %563 = vmatprep.subr.mxu0 0.0
  %564 = vmatpush1.msra.mxu0 0.0
  %565 = vmatprep.subr.mxu0 0.0
  %566 = vmatpush1.msra.mxu0 0.0
  %567 = vmatprep.subr.mxu0 0.0
  %568 = vmatpush1.msra.mxu0 0.0
  %569 = vmatprep.subr.mxu0 0.0
  %570 = vmatpush1.msra.mxu0 0.0
  %571 = vmatprep.subr.mxu0 0.0
  %572 = vmatpush1.msra.mxu0 0.0
  %573 = vmatprep.subr.mxu0 0.0
  %574 = vmatpush1.msra.mxu0 0.0
  %575 = vmatprep.subr.mxu0 0.0
  %576 = vmatpush1.msra.mxu0 0.0
  %577 = vmatprep.subr.mxu0 0.0
  %578 = vmatpush1.msra.mxu0 0.0
  %579 = vmatprep.subr.mxu0 0.0
  %580 = vmatpush1.msra.mxu0 0.0
  %581 = vmatprep.subr.mxu0 0.0
  %582 = vmatpush1.msra.mxu0 0.0
  %583 = vmatprep.subr.mxu0 0.0
  %584 = vmatpush1.msra.mxu0 0.0
  %585 = vmatprep.subr.mxu0 0.0
  %586 = vmatpush1.msra.mxu0 0.0
  %587 = vmatprep.subr.mxu0 0.0
  %588 = vmatpush1.msra.mxu0 0.0
  %589 = vmatprep.subr.mxu0 0.0
  %590 = vmatpush1.msra.mxu0 0.0
  %591 = vmatprep.subr.mxu0 0.0
  %592 = vmatpush1.msra.mxu0 0.0
  %593 = vmatprep.subr.mxu0 0.0
  %594 = vmatpush1.msra.mxu0 0.0
  %595 = vmatprep.subr.mxu0 0.0
  %596 = vmatpush1.msra.mxu0 0.0
  %597 = vmatprep.subr.mxu0 0.0
  %598 = vmatpush1.msra.mxu0 0.0
  %599 = vmatprep.subr.mxu0 0.0
  %600 = vmatpush1.msra.mxu0 0.0
  %601 = vmatprep.subr.mxu0 0.0
  %602 = vmatpush1.msra.mxu0 0.0
  %603 = vmatprep.subr.mxu0 0.0
  %604 = vmatpush1.msra.mxu0 0.0
  %605 = vmatprep.subr.mxu0 0.0
  %606 = vmatpush1.msra.mxu0 0.0
  %607 = vmatprep.subr.mxu0 0.0
  %608 = vmatpush1.msra.mxu0 0.0
  %609 = vmatprep.subr.mxu0 0.0
  %610 = vmatpush1.msra.mxu0 0.0
  %611 = vmatprep.subr.mxu0 0.0
  %612 = vmatpush1.msra.mxu0 0.0
  %613 = vmatprep.subr.mxu0 0.0
  %614 = vmatpush1.msra.mxu0 0.0
  %615 = vmatprep.subr.mxu0 0.0
  %616 = vmatpush1.msra.mxu0 0.0
  %617 = vmatprep.subr.mxu0 0.0
  %618 = vmatpush1.msra.mxu0 0.0
  %619 = vmatprep.mubr.f32.mxu0 0.0
  %620 = vmatmul.mubr.f32.gmra.mrb[0].mxu0 %v544
  %v621 = vpop.f32.mrb[0].mxu0
  %v622 = vadd.f32 0.0, %v621
  %v623 = vpop.f32.mrb[0].mxu0
  %v624 = vadd.f32 0.0, %v623
  %625 = vmatprep.mubr.f32.mxu0 0.0
  %626 = vmatmul.mubr.f32.gmra.mrb[0].mxu0 %v547
  %v627 = vpop.f32.mrb[0].mxu0
  %v628 = vadd.f32 0.0, %v627
  %v629 = vpop.f32.mrb[0].mxu0
  %v630 = vadd.f32 0.0, %v629
  %631 = vmatprep.mubr.f32.mxu0 0.0
  %632 = vmatmul.mubr.f32.gmra.mrb[0].mxu0 %v550
  %v633 = vpop.f32.mrb[0].mxu0
  %v634 = vadd.f32 0.0, %v633
  %v635 = vpop.f32.mrb[0].mxu0
  %v636 = vadd.f32 0.0, %v635
  %637 = vmatprep.mubr.f32.mxu0 0.0
  %638 = vmatmul.mubr.f32.gmra.mrb[0].mxu0 %v553
  %v639 = vpop.f32.mrb[0].mxu0
  %v640 = vadd.f32 0.0, %v639
  %v641 = vpop.f32.mrb[0].mxu0
  %v642 = vadd.f32 0.0, %v641
  %643 = vdwg.mxu0
  %644 = vmatprep.subr.mxu0 %v514
  %645 = vmatpush1.msra.mxu0 %v512
  %646 = vmatprep.subr.mxu0 %v522
  %647 = vmatpush1.msra.mxu0 %v520
  %648 = vmatprep.subr.mxu0 %v530
  %649 = vmatpush1.msra.mxu0 %v528
  %650 = vmatprep.subr.mxu0 %v538
  %651 = vmatpush1.msra.mxu0 %v536
  %652 = vmatprep.subr.mxu0 0.0
  %653 = vmatpush1.msra.mxu0 0.0
  %654 = vmatprep.subr.mxu0 0.0
  %655 = vmatpush1.msra.mxu0 0.0
  %656 = vmatprep.subr.mxu0 0.0
  %657 = vmatpush1.msra.mxu0 0.0
  %658 = vmatprep.subr.mxu0 0.0
  %659 = vmatpush1.msra.mxu0 0.0
  %660 = vmatprep.subr.mxu0 0.0
  %661 = vmatpush1.msra.mxu0 0.0
  %662 = vmatprep.subr.mxu0 0.0
  %663 = vmatpush1.msra.mxu0 0.0
  %664 = vmatprep.subr.mxu0 0.0
  %665 = vmatpush1.msra.mxu0 0.0
  %666 = vmatprep.subr.mxu0 0.0
  %667 = vmatpush1.msra.mxu0 0.0
  %668 = vmatprep.subr.mxu0 0.0
  %669 = vmatpush1.msra.mxu0 0.0
  %670 = vmatprep.subr.mxu0 0.0
  %671 = vmatpush1.msra.mxu0 0.0
  %672 = vmatprep.subr.mxu0 0.0
  %673 = vmatpush1.msra.mxu0 0.0
  %674 = vmatprep.subr.mxu0 0.0
  %675 = vmatpush1.msra.mxu0 0.0
  %676 = vmatprep.subr.mxu0 0.0
  %677 = vmatpush1.msra.mxu0 0.0
  %678 = vmatprep.subr.mxu0 0.0
  %679 = vmatpush1.msra.mxu0 0.0
  %680 = vmatprep.subr.mxu0 0.0
  %681 = vmatpush1.msra.mxu0 0.0
  %682 = vmatprep.subr.mxu0 0.0
  %683 = vmatpush1.msra.mxu0 0.0
  %684 = vmatprep.subr.mxu0 0.0
  %685 = vmatpush1.msra.mxu0 0.0
  %686 = vmatprep.subr.mxu0 0.0
  %687 = vmatpush1.msra.mxu0 0.0
  %688 = vmatprep.subr.mxu0 0.0
  %689 = vmatpush1.msra.mxu0 0.0
  %690 = vmatprep.subr.mxu0 0.0
  %691 = vmatpush1.msra.mxu0 0.0
  %692 = vmatprep.subr.mxu0 0.0
  %693 = vmatpush1.msra.mxu0 0.0
  %694 = vmatprep.subr.mxu0 0.0
  %695 = vmatpush1.msra.mxu0 0.0
  %696 = vmatprep.subr.mxu0 0.0
  %697 = vmatpush1.msra.mxu0 0.0
  %698 = vmatprep.subr.mxu0 0.0
  %699 = vmatpush1.msra.mxu0 0.0
  %700 = vmatprep.subr.mxu0 0.0
  %701 = vmatpush1.msra.mxu0 0.0
  %702 = vmatprep.subr.mxu0 0.0
  %703 = vmatpush1.msra.mxu0 0.0
  %704 = vmatprep.subr.mxu0 0.0
  %705 = vmatpush1.msra.mxu0 0.0
  %706 = vmatprep.subr.mxu0 0.0
  %707 = vmatpush1.msra.mxu0 0.0
  %708 = vmatprep.mubr.f32.mxu0 0.0
  %709 = vmatmul.mubr.f32.gmra.mrb[0].mxu0 %v544
  %v710 = vpop.f32.mrb[0].mxu0
  %v711 = vadd.f32 0.0, %v710
  %v712 = vpop.f32.mrb[0].mxu0
  %v713 = vadd.f32 0.0, %v712
  %714 = vmatprep.mubr.f32.mxu0 0.0
  %715 = vmatmul.mubr.f32.gmra.mrb[0].mxu0 %v547
  %v716 = vpop.f32.mrb[0].mxu0
  %v717 = vadd.f32 0.0, %v716
  %v718 = vpop.f32.mrb[0].mxu0
  %v719 = vadd.f32 0.0, %v718
  %720 = vmatprep.mubr.f32.mxu0 0.0
  %721 = vmatmul.mubr.f32.gmra.mrb[0].mxu0 %v550
  %v722 = vpop.f32.mrb[0].mxu0
  %v723 = vadd.f32 0.0, %v722
  %v724 = vpop.f32.mrb[0].mxu0
  %v725 = vadd.f32 0.0, %v724
  %726 = vmatprep.mubr.f32.mxu0 0.0
  %727 = vmatmul.mubr.f32.gmra.mrb[0].mxu0 %v553
  %v728 = vpop.f32.mrb[0].mxu0
  %v729 = vadd.f32 0.0, %v728
  %v730 = vpop.f32.mrb[0].mxu0
  %v731 = vadd.f32 0.0, %v730
  %732 = vdwg.mxu0
  %v733 = vld [vmem:[%s7] sm:$0xff]
  %v734 = vld [vmem:[%s7 + $0x8] sm:$0xff]
  %v735 = vld [vmem:[%s7 + $0x10] sm:$0xff]
  %v736 = vld [vmem:[%s7 + $0x18] sm:$0xff]
  %v737 = vld [vmem:[%s7 + $0x20] sm:$0xff]
  %v738 = vld [vmem:[%s7 + $0x28] sm:$0xff]
  %v739 = vld [vmem:[%s7 + $0x30] sm:$0xff]
  %v740 = vld [vmem:[%s7 + $0x38] sm:$0xff]
  %v741 = vld [vmem:[%s2] sm:$0xff]
  %v743 = vsel %vm46, %v733, 0
  %v746 = vsel %vm46, %v734, 0
  %v749 = vsel %vm46, %v735, 0
  %v752 = vsel %vm46, %v736, 0
  %v755 = vsel %vm46, %v737, 0
  %v758 = vsel %vm46, %v738, 0
  %v761 = vsel %vm46, %v739, 0
  %v764 = vsel %vm46, %v740, 0
  %v767 = vsel %vm46, %v741, 0
  %769 = vmatprep.subr.mxu0 0.0
  %770 = vmatpush1.xpose.msra.mxu0 %v767
  %771 = vmatprep.subr.mxu0 0.0
  %772 = vmatpush1.xpose.msra.mxu0 0.0
  %773 = vmatprep.subr.mxu0 0.0
  %774 = vmatpush1.xpose.msra.mxu0 0.0
  %775 = vmatprep.subr.mxu0 0.0
  %776 = vmatpush1.xpose.msra.mxu0 0.0
  %777 = vmatprep.subr.mxu0 0.0
  %778 = vmatpush1.xpose.msra.mxu0 0.0
  %779 = vmatprep.subr.mxu0 0.0
  %780 = vmatpush1.xpose.msra.mxu0 0.0
  %781 = vmatprep.subr.mxu0 0.0
  %782 = vmatpush1.xpose.msra.mxu0 0.0
  %783 = vmatprep.subr.mxu0 0.0
  %784 = vmatpush1.xpose.msra.mxu0 0.0
  %785 = vmatprep.subr.mxu0 0.0
  %786 = vmatpush1.xpose.msra.mxu0 0.0
  %787 = vmatprep.subr.mxu0 0.0
  %788 = vmatpush1.xpose.msra.mxu0 0.0
  %789 = vmatprep.subr.mxu0 0.0
  %790 = vmatpush1.xpose.msra.mxu0 0.0
  %791 = vmatprep.subr.mxu0 0.0
  %792 = vmatpush1.xpose.msra.mxu0 0.0
  %793 = vmatprep.subr.mxu0 0.0
  %794 = vmatpush1.xpose.msra.mxu0 0.0
  %795 = vmatprep.subr.mxu0 0.0
  %796 = vmatpush1.xpose.msra.mxu0 0.0
  %797 = vmatprep.subr.mxu0 0.0
  %798 = vmatpush1.xpose.msra.mxu0 0.0
  %799 = vmatprep.subr.mxu0 0.0
  %800 = vmatpush1.xpose.msra.mxu0 0.0
  %801 = vmatprep.subr.mxu0 0.0
  %802 = vmatpush1.xpose.msra.mxu0 0.0
  %803 = vmatprep.subr.mxu0 0.0
  %804 = vmatpush1.xpose.msra.mxu0 0.0
  %805 = vmatprep.subr.mxu0 0.0
  %806 = vmatpush1.xpose.msra.mxu0 0.0
  %807 = vmatprep.subr.mxu0 0.0
  %808 = vmatpush1.xpose.msra.mxu0 0.0
  %809 = vmatprep.subr.mxu0 0.0
  %810 = vmatpush1.xpose.msra.mxu0 0.0
  %811 = vmatprep.subr.mxu0 0.0
  %812 = vmatpush1.xpose.msra.mxu0 0.0
  %813 = vmatprep.subr.mxu0 0.0
  %814 = vmatpush1.xpose.msra.mxu0 0.0
  %815 = vmatprep.subr.mxu0 0.0
  %816 = vmatpush1.xpose.msra.mxu0 0.0
  %817 = vmatprep.subr.mxu0 0.0
  %818 = vmatpush1.xpose.msra.mxu0 0.0
  %819 = vmatprep.subr.mxu0 0.0
  %820 = vmatpush1.xpose.msra.mxu0 0.0
  %821 = vmatprep.subr.mxu0 0.0
  %822 = vmatpush1.xpose.msra.mxu0 0.0
  %823 = vmatprep.subr.mxu0 0.0
  %824 = vmatpush1.xpose.msra.mxu0 0.0
  %825 = vmatprep.subr.mxu0 0.0
  %826 = vmatpush1.xpose.msra.mxu0 0.0
  %827 = vmatprep.subr.mxu0 0.0
  %828 = vmatpush1.xpose.msra.mxu0 0.0
  %829 = vmatprep.subr.mxu0 0.0
  %830 = vmatpush1.xpose.msra.mxu0 0.0
  %831 = vmatprep.subr.mxu0 0.0
  %832 = vmatpush1.xpose.msra.mxu0 0.0
  %833 = vmatprep.mubr.f32.mxu0 0.0
  %834 = vmatmul.mubr.f32.gmra.mrb[0].mxu0 %v743
  %v835 = vpop.f32.mrb[0].mxu0
  %v836 = vadd.f32 0.0, %v835
  %v837 = vpop.f32.mrb[0].mxu0
  %838 = vmatprep.mubr.f32.mxu0 0.0
  %839 = vmatmul.mubr.f32.gmra.mrb[0].mxu0 %v746
  %v840 = vpop.f32.mrb[0].mxu0
  %v841 = vadd.f32 0.0, %v840
  %v842 = vpop.f32.mrb[0].mxu0
  %843 = vmatprep.mubr.f32.mxu0 0.0
  %844 = vmatmul.mubr.f32.gmra.mrb[0].mxu0 %v749
  %v845 = vpop.f32.mrb[0].mxu0
  %v846 = vadd.f32 0.0, %v845
  %v847 = vpop.f32.mrb[0].mxu0
  %848 = vmatprep.mubr.f32.mxu0 0.0
  %849 = vmatmul.mubr.f32.gmra.mrb[0].mxu0 %v752
  %v850 = vpop.f32.mrb[0].mxu0
  %v851 = vadd.f32 0.0, %v850
  %v852 = vpop.f32.mrb[0].mxu0
  %853 = vmatprep.mubr.f32.mxu0 0.0
  %854 = vmatmul.mubr.f32.gmra.mrb[0].mxu0 %v755
  %v855 = vpop.f32.mrb[0].mxu0
  %v856 = vadd.f32 0.0, %v855
  %v857 = vpop.f32.mrb[0].mxu0
  %858 = vmatprep.mubr.f32.mxu0 0.0
  %859 = vmatmul.mubr.f32.gmra.mrb[0].mxu0 %v758
  %v860 = vpop.f32.mrb[0].mxu0
  %v861 = vadd.f32 0.0, %v860
  %v862 = vpop.f32.mrb[0].mxu0
  %863 = vmatprep.mubr.f32.mxu0 0.0
  %864 = vmatmul.mubr.f32.gmra.mrb[0].mxu0 %v761
  %v865 = vpop.f32.mrb[0].mxu0
  %v866 = vadd.f32 0.0, %v865
  %v867 = vpop.f32.mrb[0].mxu0
  %868 = vmatprep.mubr.f32.mxu0 0.0
  %869 = vmatmul.mubr.f32.gmra.mrb[0].mxu0 %v764
  %v870 = vpop.f32.mrb[0].mxu0
  %v871 = vadd.f32 0.0, %v870
  %v872 = vpop.f32.mrb[0].mxu0
  %873 = vdwg.mxu0
  %874 = vxpose.xlu0.b32.start [1/16] %v836, 128
  %875 = vxpose.xlu0.b32.cont [2/16] %v841, 128
  %876 = vxpose.xlu0.b32.cont [3/16] %v846, 128
  %877 = vxpose.xlu0.b32.cont [4/16] %v851, 128
  %878 = vxpose.xlu0.b32.cont [5/16] 0.0, 128
  %879 = vxpose.xlu0.b32.cont [6/16] 0.0, 128
  %880 = vxpose.xlu0.b32.cont [7/16] 0.0, 128
  %881 = vxpose.xlu0.b32.cont [8/16] 0.0, 128
  %882 = vxpose.xlu0.b32.cont [9/16] 0.0, 128
  %883 = vxpose.xlu0.b32.cont [10/16] 0.0, 128
  %884 = vxpose.xlu0.b32.cont [11/16] 0.0, 128
  %885 = vxpose.xlu0.b32.cont [12/16] 0.0, 128
  %886 = vxpose.xlu0.b32.cont [13/16] 0.0, 128
  %887 = vxpose.xlu0.b32.cont [14/16] 0.0, 128
  %888 = vxpose.xlu0.b32.cont [15/16] 0.0, 128
  %889 = vxpose.xlu0.b32.end [16/16] 0.0, 128
  %v890 = vpop.trf.xlu0
  %v891 = vpop.trf.xlu0
  %v892 = vpop.trf.xlu0
  %v893 = vpop.trf.xlu0
  %v894 = vpop.trf.xlu0
  %v895 = vpop.trf.xlu0
  %v896 = vpop.trf.xlu0
  %v897 = vpop.trf.xlu0
  %v898 = vpop.trf.xlu0
  %v899 = vpop.trf.xlu0
  %v900 = vpop.trf.xlu0
  %v901 = vpop.trf.xlu0
  %v902 = vpop.trf.xlu0
  %v903 = vpop.trf.xlu0
  %v904 = vpop.trf.xlu0
  %v905 = vpop.trf.xlu0
  %v907 = vsel %vm46, %v890, 0
  %909 = vmatprep.subr.mxu0 %v624
  %910 = vmatpush1.msra.mxu0 %v622
  %911 = vmatprep.subr.mxu0 %v630
  %912 = vmatpush1.msra.mxu0 %v628
  %913 = vmatprep.subr.mxu0 %v636
  %914 = vmatpush1.msra.mxu0 %v634
  %915 = vmatprep.subr.mxu0 %v642
  %916 = vmatpush1.msra.mxu0 %v640
  %917 = vmatprep.subr.mxu0 0.0
  %918 = vmatpush1.msra.mxu0 0.0
  %919 = vmatprep.subr.mxu0 0.0
  %920 = vmatpush1.msra.mxu0 0.0
  %921 = vmatprep.subr.mxu0 0.0
  %922 = vmatpush1.msra.mxu0 0.0
  %923 = vmatprep.subr.mxu0 0.0
  %924 = vmatpush1.msra.mxu0 0.0
  %925 = vmatprep.subr.mxu0 0.0
  %926 = vmatpush1.msra.mxu0 0.0
  %927 = vmatprep.subr.mxu0 0.0
  %928 = vmatpush1.msra.mxu0 0.0
  %929 = vmatprep.subr.mxu0 0.0
  %930 = vmatpush1.msra.mxu0 0.0
  %931 = vmatprep.subr.mxu0 0.0
  %932 = vmatpush1.msra.mxu0 0.0
  %933 = vmatprep.subr.mxu0 0.0
  %934 = vmatpush1.msra.mxu0 0.0
  %935 = vmatprep.subr.mxu0 0.0
  %936 = vmatpush1.msra.mxu0 0.0
  %937 = vmatprep.subr.mxu0 0.0
  %938 = vmatpush1.msra.mxu0 0.0
  %939 = vmatprep.subr.mxu0 0.0
  %940 = vmatpush1.msra.mxu0 0.0
  %941 = vmatprep.subr.mxu0 0.0
  %942 = vmatpush1.msra.mxu0 0.0
  %943 = vmatprep.subr.mxu0 0.0
  %944 = vmatpush1.msra.mxu0 0.0
  %945 = vmatprep.subr.mxu0 0.0
  %946 = vmatpush1.msra.mxu0 0.0
  %947 = vmatprep.subr.mxu0 0.0
  %948 = vmatpush1.msra.mxu0 0.0
  %949 = vmatprep.subr.mxu0 0.0
  %950 = vmatpush1.msra.mxu0 0.0
  %951 = vmatprep.subr.mxu0 0.0
  %952 = vmatpush1.msra.mxu0 0.0
  %953 = vmatprep.subr.mxu0 0.0
  %954 = vmatpush1.msra.mxu0 0.0
  %955 = vmatprep.subr.mxu0 0.0
  %956 = vmatpush1.msra.mxu0 0.0
  %957 = vmatprep.subr.mxu0 0.0
  %958 = vmatpush1.msra.mxu0 0.0
  %959 = vmatprep.subr.mxu0 0.0
  %960 = vmatpush1.msra.mxu0 0.0
  %961 = vmatprep.subr.mxu0 0.0
  %962 = vmatpush1.msra.mxu0 0.0
  %963 = vmatprep.subr.mxu0 0.0
  %964 = vmatpush1.msra.mxu0 0.0
  %965 = vmatprep.subr.mxu0 0.0
  %966 = vmatpush1.msra.mxu0 0.0
  %967 = vmatprep.subr.mxu0 0.0
  %968 = vmatpush1.msra.mxu0 0.0
  %969 = vmatprep.subr.mxu0 0.0
  %970 = vmatpush1.msra.mxu0 0.0
  %971 = vmatprep.subr.mxu0 0.0
  %972 = vmatpush1.msra.mxu0 0.0
  %973 = vmatprep.mubr.f32.mxu0 0.0
  %974 = vmatmul.mubr.f32.gmra.mrb[0].mxu0 %v907
  %v975 = vpop.f32.mrb[0].mxu0
  %v976 = vadd.f32 0.0, %v975
  %v977 = vpop.f32.mrb[0].mxu0
  %v978 = vadd.f32 0.0, %v977
  %979 = vdwg.mxu0
  %v980 = vmul.f32 %v976, 0.17677669
  %v981 = vmul.f32 %v978, 0.17677669
  %v982 = vrot.slane %v980, 4
  %v983 = vmax.f32 %v980, %v982
  %v984 = vrot.slane %v983, 2
  %v985 = vmax.f32 %v983, %v984
  %v986 = vrot.slane %v985, 1
  %v987 = vmax.f32 %v985, %v986
  %v988 = vrot.slane %v981, 4
  %v989 = vmax.f32 %v981, %v988
  %v990 = vrot.slane %v989, 2
  %v991 = vmax.f32 %v989, %v990
  %v992 = vrot.slane %v991, 1
  %v993 = vmax.f32 %v991, %v992
  %v994 = vsub.f32 %v980, %v987
  %v995 = vsub.f32 %v981, %v993
  %v996 = vmul.f32 %v994, 1.442695
  %v997 = vpow.pop %v996
  %v998 = vmul.f32 %v995, 1.442695
  %v999 = vpow.pop %v998
  %v1000 = vrot.slane %v997, 4
  %v1001 = vadd.f32 %v997, %v1000
  %v1002 = vrot.slane %v1001, 2
  %v1003 = vadd.f32 %v1001, %v1002
  %v1004 = vrot.slane %v1003, 1
  %v1005 = vadd.f32 %v1003, %v1004
  %v1006 = vrot.slane %v999, 4
  %v1007 = vadd.f32 %v999, %v1006
  %v1008 = vrot.slane %v1007, 2
  %v1009 = vadd.f32 %v1007, %v1008
  %v1010 = vrot.slane %v1009, 1
  %v1011 = vadd.f32 %v1009, %v1010
  %v1012 = vrcp.pop %v1005
  %v1013 = vrcp.pop %v1011
  %v1014 = vmul.f32 %v997, %v1012
  %v1015 = vmul.f32 %v999, %v1013
  %vm1016 = vcmask 64512
  %v1018 = vsel %vm1016, %v856, 0
  %v1021 = vsel %vm1016, %v861, 0
  %v1024 = vsel %vm1016, %v866, 0
  %v1027 = vsel %vm1016, %v871, 0
  %1029 = vmatprep.subr.mxu0 %v1015
  %1030 = vmatpush1.msra.mxu0 %v1014
  %1031 = vmatprep.subr.mxu0 0.0
  %1032 = vmatpush1.msra.mxu0 0.0
  %1033 = vmatprep.subr.mxu0 0.0
  %1034 = vmatpush1.msra.mxu0 0.0
  %1035 = vmatprep.subr.mxu0 0.0
  %1036 = vmatpush1.msra.mxu0 0.0
  %1037 = vmatprep.subr.mxu0 0.0
  %1038 = vmatpush1.msra.mxu0 0.0
  %1039 = vmatprep.subr.mxu0 0.0
  %1040 = vmatpush1.msra.mxu0 0.0
  %1041 = vmatprep.subr.mxu0 0.0
  %1042 = vmatpush1.msra.mxu0 0.0
  %1043 = vmatprep.subr.mxu0 0.0
  %1044 = vmatpush1.msra.mxu0 0.0
  %1045 = vmatprep.subr.mxu0 0.0
  %1046 = vmatpush1.msra.mxu0 0.0
  %1047 = vmatprep.subr.mxu0 0.0
  %1048 = vmatpush1.msra.mxu0 0.0
  %1049 = vmatprep.subr.mxu0 0.0
  %1050 = vmatpush1.msra.mxu0 0.0
  %1051 = vmatprep.subr.mxu0 0.0
  %1052 = vmatpush1.msra.mxu0 0.0
  %1053 = vmatprep.subr.mxu0 0.0
  %1054 = vmatpush1.msra.mxu0 0.0
  %1055 = vmatprep.subr.mxu0 0.0
  %1056 = vmatpush1.msra.mxu0 0.0
  %1057 = vmatprep.subr.mxu0 0.0
  %1058 = vmatpush1.msra.mxu0 0.0
  %1059 = vmatprep.subr.mxu0 0.0
  %1060 = vmatpush1.msra.mxu0 0.0
  %1061 = vmatprep.subr.mxu0 0.0
  %1062 = vmatpush1.msra.mxu0 0.0
  %1063 = vmatprep.subr.mxu0 0.0
  %1064 = vmatpush1.msra.mxu0 0.0
  %1065 = vmatprep.subr.mxu0 0.0
  %1066 = vmatpush1.msra.mxu0 0.0
  %1067 = vmatprep.subr.mxu0 0.0
  %1068 = vmatpush1.msra.mxu0 0.0
  %1069 = vmatprep.subr.mxu0 0.0
  %1070 = vmatpush1.msra.mxu0 0.0
  %1071 = vmatprep.subr.mxu0 0.0
  %1072 = vmatpush1.msra.mxu0 0.0
  %1073 = vmatprep.subr.mxu0 0.0
  %1074 = vmatpush1.msra.mxu0 0.0
  %1075 = vmatprep.subr.mxu0 0.0
  %1076 = vmatpush1.msra.mxu0 0.0
  %1077 = vmatprep.subr.mxu0 0.0
  %1078 = vmatpush1.msra.mxu0 0.0
  %1079 = vmatprep.subr.mxu0 0.0
  %1080 = vmatpush1.msra.mxu0 0.0
  %1081 = vmatprep.subr.mxu0 0.0
  %1082 = vmatpush1.msra.mxu0 0.0
  %1083 = vmatprep.subr.mxu0 0.0
  %1084 = vmatpush1.msra.mxu0 0.0
  %1085 = vmatprep.subr.mxu0 0.0
  %1086 = vmatpush1.msra.mxu0 0.0
  %1087 = vmatprep.subr.mxu0 0.0
  %1088 = vmatpush1.msra.mxu0 0.0
  %1089 = vmatprep.subr.mxu0 0.0
  %1090 = vmatpush1.msra.mxu0 0.0
  %1091 = vmatprep.subr.mxu0 0.0
  %1092 = vmatpush1.msra.mxu0 0.0
  %1093 = vmatprep.mubr.f32.mxu0 0.0
  %1094 = vmatmul.mubr.f32.gmra.mrb[0].mxu0 %v1018
  %v1095 = vpop.f32.mrb[0].mxu0
  %v1096 = vadd.f32 0.0, %v1095
  %v1097 = vpop.f32.mrb[0].mxu0
  %v1098 = vadd.f32 0.0, %v1097
  %1099 = vmatprep.mubr.f32.mxu0 0.0
  %1100 = vmatmul.mubr.f32.gmra.mrb[0].mxu0 %v1021
  %v1101 = vpop.f32.mrb[0].mxu0
  %v1102 = vadd.f32 0.0, %v1101
  %v1103 = vpop.f32.mrb[0].mxu0
  %v1104 = vadd.f32 0.0, %v1103
  %1105 = vmatprep.mubr.f32.mxu0 0.0
  %1106 = vmatmul.mubr.f32.gmra.mrb[0].mxu0 %v1024
  %v1107 = vpop.f32.mrb[0].mxu0
  %v1108 = vadd.f32 0.0, %v1107
  %v1109 = vpop.f32.mrb[0].mxu0
  %v1110 = vadd.f32 0.0, %v1109
  %1111 = vmatprep.mubr.f32.mxu0 0.0
  %1112 = vmatmul.mubr.f32.gmra.mrb[0].mxu0 %v1027
  %v1113 = vpop.f32.mrb[0].mxu0
  %v1114 = vadd.f32 0.0, %v1113
  %v1115 = vpop.f32.mrb[0].mxu0
  %v1116 = vadd.f32 0.0, %v1115
  %1117 = vdwg.mxu0
  %s1118 = scalar_lea.vmem %s2, 8
  %v1119 = vld [vmem:[%s1118] sm:$0xff]
  %v1121 = vsel %vm46, %v1119, 0
  %1123 = vmatprep.subr.mxu0 0.0
  %1124 = vmatpush1.xpose.msra.mxu0 %v1121
  %1125 = vmatprep.subr.mxu0 0.0
  %1126 = vmatpush1.xpose.msra.mxu0 0.0
  %1127 = vmatprep.subr.mxu0 0.0
  %1128 = vmatpush1.xpose.msra.mxu0 0.0
  %1129 = vmatprep.subr.mxu0 0.0
  %1130 = vmatpush1.xpose.msra.mxu0 0.0
  %1131 = vmatprep.subr.mxu0 0.0
  %1132 = vmatpush1.xpose.msra.mxu0 0.0
  %1133 = vmatprep.subr.mxu0 0.0
  %1134 = vmatpush1.xpose.msra.mxu0 0.0
  %1135 = vmatprep.subr.mxu0 0.0
  %1136 = vmatpush1.xpose.msra.mxu0 0.0
  %1137 = vmatprep.subr.mxu0 0.0
  %1138 = vmatpush1.xpose.msra.mxu0 0.0
  %1139 = vmatprep.subr.mxu0 0.0
  %1140 = vmatpush1.xpose.msra.mxu0 0.0
  %1141 = vmatprep.subr.mxu0 0.0
  %1142 = vmatpush1.xpose.msra.mxu0 0.0
  %1143 = vmatprep.subr.mxu0 0.0
  %1144 = vmatpush1.xpose.msra.mxu0 0.0
  %1145 = vmatprep.subr.mxu0 0.0
  %1146 = vmatpush1.xpose.msra.mxu0 0.0
  %1147 = vmatprep.subr.mxu0 0.0
  %1148 = vmatpush1.xpose.msra.mxu0 0.0
  %1149 = vmatprep.subr.mxu0 0.0
  %1150 = vmatpush1.xpose.msra.mxu0 0.0
  %1151 = vmatprep.subr.mxu0 0.0
  %1152 = vmatpush1.xpose.msra.mxu0 0.0
  %1153 = vmatprep.subr.mxu0 0.0
  %1154 = vmatpush1.xpose.msra.mxu0 0.0
  %1155 = vmatprep.subr.mxu0 0.0
  %1156 = vmatpush1.xpose.msra.mxu0 0.0
  %1157 = vmatprep.subr.mxu0 0.0
  %1158 = vmatpush1.xpose.msra.mxu0 0.0
  %1159 = vmatprep.subr.mxu0 0.0
  %1160 = vmatpush1.xpose.msra.mxu0 0.0
  %1161 = vmatprep.subr.mxu0 0.0
  %1162 = vmatpush1.xpose.msra.mxu0 0.0
  %1163 = vmatprep.subr.mxu0 0.0
  %1164 = vmatpush1.xpose.msra.mxu0 0.0
  %1165 = vmatprep.subr.mxu0 0.0
  %1166 = vmatpush1.xpose.msra.mxu0 0.0
  %1167 = vmatprep.subr.mxu0 0.0
  %1168 = vmatpush1.xpose.msra.mxu0 0.0
  %1169 = vmatprep.subr.mxu0 0.0
  %1170 = vmatpush1.xpose.msra.mxu0 0.0
  %1171 = vmatprep.subr.mxu0 0.0
  %1172 = vmatpush1.xpose.msra.mxu0 0.0
  %1173 = vmatprep.subr.mxu0 0.0
  %1174 = vmatpush1.xpose.msra.mxu0 0.0
  %1175 = vmatprep.subr.mxu0 0.0
  %1176 = vmatpush1.xpose.msra.mxu0 0.0
  %1177 = vmatprep.subr.mxu0 0.0
  %1178 = vmatpush1.xpose.msra.mxu0 0.0
  %1179 = vmatprep.subr.mxu0 0.0
  %1180 = vmatpush1.xpose.msra.mxu0 0.0
  %1181 = vmatprep.subr.mxu0 0.0
  %1182 = vmatpush1.xpose.msra.mxu0 0.0
  %1183 = vmatprep.subr.mxu0 0.0
  %1184 = vmatpush1.xpose.msra.mxu0 0.0
  %1185 = vmatprep.subr.mxu0 0.0
  %1186 = vmatpush1.xpose.msra.mxu0 0.0
  %1187 = vmatprep.mubr.f32.mxu0 0.0
  %1188 = vmatmul.mubr.f32.gmra.mrb[0].mxu0 %v743
  %v1189 = vpop.f32.mrb[0].mxu0
  %v1190 = vadd.f32 0.0, %v1189
  %v1191 = vpop.f32.mrb[0].mxu0
  %1192 = vmatprep.mubr.f32.mxu0 0.0
  %1193 = vmatmul.mubr.f32.gmra.mrb[0].mxu0 %v746
  %v1194 = vpop.f32.mrb[0].mxu0
  %v1195 = vadd.f32 0.0, %v1194
  %v1196 = vpop.f32.mrb[0].mxu0
  %1197 = vmatprep.mubr.f32.mxu0 0.0
  %1198 = vmatmul.mubr.f32.gmra.mrb[0].mxu0 %v749
  %v1199 = vpop.f32.mrb[0].mxu0
  %v1200 = vadd.f32 0.0, %v1199
  %v1201 = vpop.f32.mrb[0].mxu0
  %1202 = vmatprep.mubr.f32.mxu0 0.0
  %1203 = vmatmul.mubr.f32.gmra.mrb[0].mxu0 %v752
  %v1204 = vpop.f32.mrb[0].mxu0
  %v1205 = vadd.f32 0.0, %v1204
  %v1206 = vpop.f32.mrb[0].mxu0
  %1207 = vmatprep.mubr.f32.mxu0 0.0
  %1208 = vmatmul.mubr.f32.gmra.mrb[0].mxu0 %v755
  %v1209 = vpop.f32.mrb[0].mxu0
  %v1210 = vadd.f32 0.0, %v1209
  %v1211 = vpop.f32.mrb[0].mxu0
  %1212 = vmatprep.mubr.f32.mxu0 0.0
  %1213 = vmatmul.mubr.f32.gmra.mrb[0].mxu0 %v758
  %v1214 = vpop.f32.mrb[0].mxu0
  %v1215 = vadd.f32 0.0, %v1214
  %v1216 = vpop.f32.mrb[0].mxu0
  %1217 = vmatprep.mubr.f32.mxu0 0.0
  %1218 = vmatmul.mubr.f32.gmra.mrb[0].mxu0 %v761
  %v1219 = vpop.f32.mrb[0].mxu0
  %v1220 = vadd.f32 0.0, %v1219
  %v1221 = vpop.f32.mrb[0].mxu0
  %1222 = vmatprep.mubr.f32.mxu0 0.0
  %1223 = vmatmul.mubr.f32.gmra.mrb[0].mxu0 %v764
  %v1224 = vpop.f32.mrb[0].mxu0
  %v1225 = vadd.f32 0.0, %v1224
  %v1226 = vpop.f32.mrb[0].mxu0
  %1227 = vdwg.mxu0
  %1228 = vxpose.xlu0.b32.start [1/16] %v1190, 128
  %1229 = vxpose.xlu0.b32.cont [2/16] %v1195, 128
  %1230 = vxpose.xlu0.b32.cont [3/16] %v1200, 128
  %1231 = vxpose.xlu0.b32.cont [4/16] %v1205, 128
  %1232 = vxpose.xlu0.b32.cont [5/16] 0.0, 128
  %1233 = vxpose.xlu0.b32.cont [6/16] 0.0, 128
  %1234 = vxpose.xlu0.b32.cont [7/16] 0.0, 128
  %1235 = vxpose.xlu0.b32.cont [8/16] 0.0, 128
  %1236 = vxpose.xlu0.b32.cont [9/16] 0.0, 128
  %1237 = vxpose.xlu0.b32.cont [10/16] 0.0, 128
  %1238 = vxpose.xlu0.b32.cont [11/16] 0.0, 128
  %1239 = vxpose.xlu0.b32.cont [12/16] 0.0, 128
  %1240 = vxpose.xlu0.b32.cont [13/16] 0.0, 128
  %1241 = vxpose.xlu0.b32.cont [14/16] 0.0, 128
  %1242 = vxpose.xlu0.b32.cont [15/16] 0.0, 128
  %1243 = vxpose.xlu0.b32.end [16/16] 0.0, 128
  %v1244 = vpop.trf.xlu0
  %v1245 = vpop.trf.xlu0
  %v1246 = vpop.trf.xlu0
  %v1247 = vpop.trf.xlu0
  %v1248 = vpop.trf.xlu0
  %v1249 = vpop.trf.xlu0
  %v1250 = vpop.trf.xlu0
  %v1251 = vpop.trf.xlu0
  %v1252 = vpop.trf.xlu0
  %v1253 = vpop.trf.xlu0
  %v1254 = vpop.trf.xlu0
  %v1255 = vpop.trf.xlu0
  %v1256 = vpop.trf.xlu0
  %v1257 = vpop.trf.xlu0
  %v1258 = vpop.trf.xlu0
  %v1259 = vpop.trf.xlu0
  %v1261 = vsel %vm46, %v1244, 0
  %1263 = vmatprep.subr.mxu0 %v713
  %1264 = vmatpush1.msra.mxu0 %v711
  %1265 = vmatprep.subr.mxu0 %v719
  %1266 = vmatpush1.msra.mxu0 %v717
  %1267 = vmatprep.subr.mxu0 %v725
  %1268 = vmatpush1.msra.mxu0 %v723
  %1269 = vmatprep.subr.mxu0 %v731
  %1270 = vmatpush1.msra.mxu0 %v729
  %1271 = vmatprep.subr.mxu0 0.0
  %1272 = vmatpush1.msra.mxu0 0.0
  %1273 = vmatprep.subr.mxu0 0.0
  %1274 = vmatpush1.msra.mxu0 0.0
  %1275 = vmatprep.subr.mxu0 0.0
  %1276 = vmatpush1.msra.mxu0 0.0
  %1277 = vmatprep.subr.mxu0 0.0
  %1278 = vmatpush1.msra.mxu0 0.0
  %1279 = vmatprep.subr.mxu0 0.0
  %1280 = vmatpush1.msra.mxu0 0.0
  %1281 = vmatprep.subr.mxu0 0.0
  %1282 = vmatpush1.msra.mxu0 0.0
  %1283 = vmatprep.subr.mxu0 0.0
  %1284 = vmatpush1.msra.mxu0 0.0
  %1285 = vmatprep.subr.mxu0 0.0
  %1286 = vmatpush1.msra.mxu0 0.0
  %1287 = vmatprep.subr.mxu0 0.0
  %1288 = vmatpush1.msra.mxu0 0.0
  %1289 = vmatprep.subr.mxu0 0.0
  %1290 = vmatpush1.msra.mxu0 0.0
  %1291 = vmatprep.subr.mxu0 0.0
  %1292 = vmatpush1.msra.mxu0 0.0
  %1293 = vmatprep.subr.mxu0 0.0
  %1294 = vmatpush1.msra.mxu0 0.0
  %1295 = vmatprep.subr.mxu0 0.0
  %1296 = vmatpush1.msra.mxu0 0.0
  %1297 = vmatprep.subr.mxu0 0.0
  %1298 = vmatpush1.msra.mxu0 0.0
  %1299 = vmatprep.subr.mxu0 0.0
  %1300 = vmatpush1.msra.mxu0 0.0
  %1301 = vmatprep.subr.mxu0 0.0
  %1302 = vmatpush1.msra.mxu0 0.0
  %1303 = vmatprep.subr.mxu0 0.0
  %1304 = vmatpush1.msra.mxu0 0.0
  %1305 = vmatprep.subr.mxu0 0.0
  %1306 = vmatpush1.msra.mxu0 0.0
  %1307 = vmatprep.subr.mxu0 0.0
  %1308 = vmatpush1.msra.mxu0 0.0
  %1309 = vmatprep.subr.mxu0 0.0
  %1310 = vmatpush1.msra.mxu0 0.0
  %1311 = vmatprep.subr.mxu0 0.0
  %1312 = vmatpush1.msra.mxu0 0.0
  %1313 = vmatprep.subr.mxu0 0.0
  %1314 = vmatpush1.msra.mxu0 0.0
  %1315 = vmatprep.subr.mxu0 0.0
  %1316 = vmatpush1.msra.mxu0 0.0
  %1317 = vmatprep.subr.mxu0 0.0
  %1318 = vmatpush1.msra.mxu0 0.0
  %1319 = vmatprep.subr.mxu0 0.0
  %1320 = vmatpush1.msra.mxu0 0.0
  %1321 = vmatprep.subr.mxu0 0.0
  %1322 = vmatpush1.msra.mxu0 0.0
  %1323 = vmatprep.subr.mxu0 0.0
  %1324 = vmatpush1.msra.mxu0 0.0
  %1325 = vmatprep.subr.mxu0 0.0
  %1326 = vmatpush1.msra.mxu0 0.0
  %1327 = vmatprep.mubr.f32.mxu0 0.0
  %1328 = vmatmul.mubr.f32.gmra.mrb[0].mxu0 %v1261
  %v1329 = vpop.f32.mrb[0].mxu0
  %v1330 = vadd.f32 0.0, %v1329
  %v1331 = vpop.f32.mrb[0].mxu0
  %v1332 = vadd.f32 0.0, %v1331
  %1333 = vdwg.mxu0
  %v1334 = vmul.f32 %v1330, 0.17677669
  %v1335 = vmul.f32 %v1332, 0.17677669
  %v1336 = vrot.slane %v1334, 4
  %v1337 = vmax.f32 %v1334, %v1336
  %v1338 = vrot.slane %v1337, 2
  %v1339 = vmax.f32 %v1337, %v1338
  %v1340 = vrot.slane %v1339, 1
  %v1341 = vmax.f32 %v1339, %v1340
  %v1342 = vrot.slane %v1335, 4
  %v1343 = vmax.f32 %v1335, %v1342
  %v1344 = vrot.slane %v1343, 2
  %v1345 = vmax.f32 %v1343, %v1344
  %v1346 = vrot.slane %v1345, 1
  %v1347 = vmax.f32 %v1345, %v1346
  %v1348 = vsub.f32 %v1334, %v1341
  %v1349 = vsub.f32 %v1335, %v1347
  %v1350 = vmul.f32 %v1348, 1.442695
  %v1351 = vpow.pop %v1350
  %v1352 = vmul.f32 %v1349, 1.442695
  %v1353 = vpow.pop %v1352
  %v1354 = vrot.slane %v1351, 4
  %v1355 = vadd.f32 %v1351, %v1354
  %v1356 = vrot.slane %v1355, 2
  %v1357 = vadd.f32 %v1355, %v1356
  %v1358 = vrot.slane %v1357, 1
  %v1359 = vadd.f32 %v1357, %v1358
  %v1360 = vrot.slane %v1353, 4
  %v1361 = vadd.f32 %v1353, %v1360
  %v1362 = vrot.slane %v1361, 2
  %v1363 = vadd.f32 %v1361, %v1362
  %v1364 = vrot.slane %v1363, 1
  %v1365 = vadd.f32 %v1363, %v1364
  %v1366 = vrcp.pop %v1359
  %v1367 = vrcp.pop %v1365
  %v1368 = vmul.f32 %v1351, %v1366
  %v1369 = vmul.f32 %v1353, %v1367
  %v1371 = vsel %vm1016, %v1210, 0
  %v1374 = vsel %vm1016, %v1215, 0
  %v1377 = vsel %vm1016, %v1220, 0
  %v1380 = vsel %vm1016, %v1225, 0
  %1382 = vmatprep.subr.mxu0 %v1369
  %1383 = vmatpush1.msra.mxu0 %v1368
  %1384 = vmatprep.subr.mxu0 0.0
  %1385 = vmatpush1.msra.mxu0 0.0
  %1386 = vmatprep.subr.mxu0 0.0
  %1387 = vmatpush1.msra.mxu0 0.0
  %1388 = vmatprep.subr.mxu0 0.0
  %1389 = vmatpush1.msra.mxu0 0.0
  %1390 = vmatprep.subr.mxu0 0.0
  %1391 = vmatpush1.msra.mxu0 0.0
  %1392 = vmatprep.subr.mxu0 0.0
  %1393 = vmatpush1.msra.mxu0 0.0
  %1394 = vmatprep.subr.mxu0 0.0
  %1395 = vmatpush1.msra.mxu0 0.0
  %1396 = vmatprep.subr.mxu0 0.0
  %1397 = vmatpush1.msra.mxu0 0.0
  %1398 = vmatprep.subr.mxu0 0.0
  %1399 = vmatpush1.msra.mxu0 0.0
  %1400 = vmatprep.subr.mxu0 0.0
  %1401 = vmatpush1.msra.mxu0 0.0
  %1402 = vmatprep.subr.mxu0 0.0
  %1403 = vmatpush1.msra.mxu0 0.0
  %1404 = vmatprep.subr.mxu0 0.0
  %1405 = vmatpush1.msra.mxu0 0.0
  %1406 = vmatprep.subr.mxu0 0.0
  %1407 = vmatpush1.msra.mxu0 0.0
  %1408 = vmatprep.subr.mxu0 0.0
  %1409 = vmatpush1.msra.mxu0 0.0
  %1410 = vmatprep.subr.mxu0 0.0
  %1411 = vmatpush1.msra.mxu0 0.0
  %1412 = vmatprep.subr.mxu0 0.0
  %1413 = vmatpush1.msra.mxu0 0.0
  %1414 = vmatprep.subr.mxu0 0.0
  %1415 = vmatpush1.msra.mxu0 0.0
  %1416 = vmatprep.subr.mxu0 0.0
  %1417 = vmatpush1.msra.mxu0 0.0
  %1418 = vmatprep.subr.mxu0 0.0
  %1419 = vmatpush1.msra.mxu0 0.0
  %1420 = vmatprep.subr.mxu0 0.0
  %1421 = vmatpush1.msra.mxu0 0.0
  %1422 = vmatprep.subr.mxu0 0.0
  %1423 = vmatpush1.msra.mxu0 0.0
  %1424 = vmatprep.subr.mxu0 0.0
  %1425 = vmatpush1.msra.mxu0 0.0
  %1426 = vmatprep.subr.mxu0 0.0
  %1427 = vmatpush1.msra.mxu0 0.0
  %1428 = vmatprep.subr.mxu0 0.0
  %1429 = vmatpush1.msra.mxu0 0.0
  %1430 = vmatprep.subr.mxu0 0.0
  %1431 = vmatpush1.msra.mxu0 0.0
  %1432 = vmatprep.subr.mxu0 0.0
  %1433 = vmatpush1.msra.mxu0 0.0
  %1434 = vmatprep.subr.mxu0 0.0
  %1435 = vmatpush1.msra.mxu0 0.0
  %1436 = vmatprep.subr.mxu0 0.0
  %1437 = vmatpush1.msra.mxu0 0.0
  %1438 = vmatprep.subr.mxu0 0.0
  %1439 = vmatpush1.msra.mxu0 0.0
  %1440 = vmatprep.subr.mxu0 0.0
  %1441 = vmatpush1.msra.mxu0 0.0
  %1442 = vmatprep.subr.mxu0 0.0
  %1443 = vmatpush1.msra.mxu0 0.0
  %1444 = vmatprep.subr.mxu0 0.0
  %1445 = vmatpush1.msra.mxu0 0.0
  %1446 = vmatprep.mubr.f32.mxu0 0.0
  %1447 = vmatmul.mubr.f32.gmra.mrb[0].mxu0 %v1371
  %v1448 = vpop.f32.mrb[0].mxu0
  %v1449 = vadd.f32 0.0, %v1448
  %v1450 = vpop.f32.mrb[0].mxu0
  %v1451 = vadd.f32 0.0, %v1450
  %1452 = vmatprep.mubr.f32.mxu0 0.0
  %1453 = vmatmul.mubr.f32.gmra.mrb[0].mxu0 %v1374
  %v1454 = vpop.f32.mrb[0].mxu0
  %v1455 = vadd.f32 0.0, %v1454
  %v1456 = vpop.f32.mrb[0].mxu0
  %v1457 = vadd.f32 0.0, %v1456
  %1458 = vmatprep.mubr.f32.mxu0 0.0
  %1459 = vmatmul.mubr.f32.gmra.mrb[0].mxu0 %v1377
  %v1460 = vpop.f32.mrb[0].mxu0
  %v1461 = vadd.f32 0.0, %v1460
  %v1462 = vpop.f32.mrb[0].mxu0
  %v1463 = vadd.f32 0.0, %v1462
  %1464 = vmatprep.mubr.f32.mxu0 0.0
  %1465 = vmatmul.mubr.f32.gmra.mrb[0].mxu0 %v1380
  %v1466 = vpop.f32.mrb[0].mxu0
  %v1467 = vadd.f32 0.0, %v1466
  %v1468 = vpop.f32.mrb[0].mxu0
  %v1469 = vadd.f32 0.0, %v1468
  %1470 = vdwg.mxu0
  %v1471 = vld [vmem:[%s8] sm:$0xf]
  %v1472 = vld [vmem:[%s9] sm:$0xf]
  %v1474 = vsel %vm46, %v1472, 0
  %1476 = vmatprep.subr.mxu0 %v1098
  %1477 = vmatpush1.msra.mxu0 %v1096
  %1478 = vmatprep.subr.mxu0 %v1104
  %1479 = vmatpush1.msra.mxu0 %v1102
  %1480 = vmatprep.subr.mxu0 %v1110
  %1481 = vmatpush1.msra.mxu0 %v1108
  %1482 = vmatprep.subr.mxu0 %v1116
  %1483 = vmatpush1.msra.mxu0 %v1114
  %1484 = vmatprep.subr.mxu0 0.0
  %1485 = vmatpush1.msra.mxu0 0.0
  %1486 = vmatprep.subr.mxu0 0.0
  %1487 = vmatpush1.msra.mxu0 0.0
  %1488 = vmatprep.subr.mxu0 0.0
  %1489 = vmatpush1.msra.mxu0 0.0
  %1490 = vmatprep.subr.mxu0 0.0
  %1491 = vmatpush1.msra.mxu0 0.0
  %1492 = vmatprep.subr.mxu0 0.0
  %1493 = vmatpush1.msra.mxu0 0.0
  %1494 = vmatprep.subr.mxu0 0.0
  %1495 = vmatpush1.msra.mxu0 0.0
  %1496 = vmatprep.subr.mxu0 0.0
  %1497 = vmatpush1.msra.mxu0 0.0
  %1498 = vmatprep.subr.mxu0 0.0
  %1499 = vmatpush1.msra.mxu0 0.0
  %1500 = vmatprep.subr.mxu0 0.0
  %1501 = vmatpush1.msra.mxu0 0.0
  %1502 = vmatprep.subr.mxu0 0.0
  %1503 = vmatpush1.msra.mxu0 0.0
  %1504 = vmatprep.subr.mxu0 0.0
  %1505 = vmatpush1.msra.mxu0 0.0
  %1506 = vmatprep.subr.mxu0 0.0
  %1507 = vmatpush1.msra.mxu0 0.0
  %1508 = vmatprep.subr.mxu0 0.0
  %1509 = vmatpush1.msra.mxu0 0.0
  %1510 = vmatprep.subr.mxu0 0.0
  %1511 = vmatpush1.msra.mxu0 0.0
  %1512 = vmatprep.subr.mxu0 0.0
  %1513 = vmatpush1.msra.mxu0 0.0
  %1514 = vmatprep.subr.mxu0 0.0
  %1515 = vmatpush1.msra.mxu0 0.0
  %1516 = vmatprep.subr.mxu0 0.0
  %1517 = vmatpush1.msra.mxu0 0.0
  %1518 = vmatprep.subr.mxu0 0.0
  %1519 = vmatpush1.msra.mxu0 0.0
  %1520 = vmatprep.subr.mxu0 0.0
  %1521 = vmatpush1.msra.mxu0 0.0
  %1522 = vmatprep.subr.mxu0 0.0
  %1523 = vmatpush1.msra.mxu0 0.0
  %1524 = vmatprep.subr.mxu0 0.0
  %1525 = vmatpush1.msra.mxu0 0.0
  %1526 = vmatprep.subr.mxu0 0.0
  %1527 = vmatpush1.msra.mxu0 0.0
  %1528 = vmatprep.subr.mxu0 0.0
  %1529 = vmatpush1.msra.mxu0 0.0
  %1530 = vmatprep.subr.mxu0 0.0
  %1531 = vmatpush1.msra.mxu0 0.0
  %1532 = vmatprep.subr.mxu0 0.0
  %1533 = vmatpush1.msra.mxu0 0.0
  %1534 = vmatprep.subr.mxu0 0.0
  %1535 = vmatpush1.msra.mxu0 0.0
  %1536 = vmatprep.subr.mxu0 0.0
  %1537 = vmatpush1.msra.mxu0 0.0
  %1538 = vmatprep.subr.mxu0 0.0
  %1539 = vmatpush1.msra.mxu0 0.0
  %1540 = vmatprep.mubr.f32.mxu0 0.0
  %1541 = vmatmul.mubr.f32.gmra.mrb[0].mxu0 %v1474
  %v1542 = vpop.f32.mrb[0].mxu0
  %v1543 = vadd.f32 0.0, %v1542
  %v1544 = vpop.f32.mrb[0].mxu0
  %v1545 = vadd.f32 0.0, %v1544
  %1546 = vdwg.mxu0
  %1547 = vmatprep.subr.mxu0 %v1451
  %1548 = vmatpush1.msra.mxu0 %v1449
  %1549 = vmatprep.subr.mxu0 %v1457
  %1550 = vmatpush1.msra.mxu0 %v1455
  %1551 = vmatprep.subr.mxu0 %v1463
  %1552 = vmatpush1.msra.mxu0 %v1461
  %1553 = vmatprep.subr.mxu0 %v1469
  %1554 = vmatpush1.msra.mxu0 %v1467
  %1555 = vmatprep.subr.mxu0 0.0
  %1556 = vmatpush1.msra.mxu0 0.0
  %1557 = vmatprep.subr.mxu0 0.0
  %1558 = vmatpush1.msra.mxu0 0.0
  %1559 = vmatprep.subr.mxu0 0.0
  %1560 = vmatpush1.msra.mxu0 0.0
  %1561 = vmatprep.subr.mxu0 0.0
  %1562 = vmatpush1.msra.mxu0 0.0
  %1563 = vmatprep.subr.mxu0 0.0
  %1564 = vmatpush1.msra.mxu0 0.0
  %1565 = vmatprep.subr.mxu0 0.0
  %1566 = vmatpush1.msra.mxu0 0.0
  %1567 = vmatprep.subr.mxu0 0.0
  %1568 = vmatpush1.msra.mxu0 0.0
  %1569 = vmatprep.subr.mxu0 0.0
  %1570 = vmatpush1.msra.mxu0 0.0
  %1571 = vmatprep.subr.mxu0 0.0
  %1572 = vmatpush1.msra.mxu0 0.0
  %1573 = vmatprep.subr.mxu0 0.0
  %1574 = vmatpush1.msra.mxu0 0.0
  %1575 = vmatprep.subr.mxu0 0.0
  %1576 = vmatpush1.msra.mxu0 0.0
  %1577 = vmatprep.subr.mxu0 0.0
  %1578 = vmatpush1.msra.mxu0 0.0
  %1579 = vmatprep.subr.mxu0 0.0
  %1580 = vmatpush1.msra.mxu0 0.0
  %1581 = vmatprep.subr.mxu0 0.0
  %1582 = vmatpush1.msra.mxu0 0.0
  %1583 = vmatprep.subr.mxu0 0.0
  %1584 = vmatpush1.msra.mxu0 0.0
  %1585 = vmatprep.subr.mxu0 0.0
  %1586 = vmatpush1.msra.mxu0 0.0
  %1587 = vmatprep.subr.mxu0 0.0
  %1588 = vmatpush1.msra.mxu0 0.0
  %1589 = vmatprep.subr.mxu0 0.0
  %1590 = vmatpush1.msra.mxu0 0.0
  %1591 = vmatprep.subr.mxu0 0.0
  %1592 = vmatpush1.msra.mxu0 0.0
  %1593 = vmatprep.subr.mxu0 0.0
  %1594 = vmatpush1.msra.mxu0 0.0
  %1595 = vmatprep.subr.mxu0 0.0
  %1596 = vmatpush1.msra.mxu0 0.0
  %1597 = vmatprep.subr.mxu0 0.0
  %1598 = vmatpush1.msra.mxu0 0.0
  %1599 = vmatprep.subr.mxu0 0.0
  %1600 = vmatpush1.msra.mxu0 0.0
  %1601 = vmatprep.subr.mxu0 0.0
  %1602 = vmatpush1.msra.mxu0 0.0
  %1603 = vmatprep.subr.mxu0 0.0
  %1604 = vmatpush1.msra.mxu0 0.0
  %1605 = vmatprep.subr.mxu0 0.0
  %1606 = vmatpush1.msra.mxu0 0.0
  %1607 = vmatprep.subr.mxu0 0.0
  %1608 = vmatpush1.msra.mxu0 0.0
  %1609 = vmatprep.subr.mxu0 0.0
  %1610 = vmatpush1.msra.mxu0 0.0
  %1611 = vmatprep.mubr.f32.mxu0 0.0
  %1612 = vmatmul.mubr.f32.gmra.mrb[0].mxu0 %v1474
  %v1613 = vpop.f32.mrb[0].mxu0
  %v1614 = vadd.f32 0.0, %v1613
  %v1615 = vpop.f32.mrb[0].mxu0
  %v1616 = vadd.f32 0.0, %v1615
  %1617 = vdwg.mxu0
  %v1619 = vsel %vm46, %v1471, 0
  %1621 = vmatprep.subr.mxu0 %v510
  %1622 = vmatpush1.msra.mxu0 %v508
  %1623 = vmatprep.subr.mxu0 %v518
  %1624 = vmatpush1.msra.mxu0 %v516
  %1625 = vmatprep.subr.mxu0 %v526
  %1626 = vmatpush1.msra.mxu0 %v524
  %1627 = vmatprep.subr.mxu0 %v534
  %1628 = vmatpush1.msra.mxu0 %v532
  %1629 = vmatprep.subr.mxu0 0.0
  %1630 = vmatpush1.msra.mxu0 0.0
  %1631 = vmatprep.subr.mxu0 0.0
  %1632 = vmatpush1.msra.mxu0 0.0
  %1633 = vmatprep.subr.mxu0 0.0
  %1634 = vmatpush1.msra.mxu0 0.0
  %1635 = vmatprep.subr.mxu0 0.0
  %1636 = vmatpush1.msra.mxu0 0.0
  %1637 = vmatprep.subr.mxu0 0.0
  %1638 = vmatpush1.msra.mxu0 0.0
  %1639 = vmatprep.subr.mxu0 0.0
  %1640 = vmatpush1.msra.mxu0 0.0
  %1641 = vmatprep.subr.mxu0 0.0
  %1642 = vmatpush1.msra.mxu0 0.0
  %1643 = vmatprep.subr.mxu0 0.0
  %1644 = vmatpush1.msra.mxu0 0.0
  %1645 = vmatprep.subr.mxu0 0.0
  %1646 = vmatpush1.msra.mxu0 0.0
  %1647 = vmatprep.subr.mxu0 0.0
  %1648 = vmatpush1.msra.mxu0 0.0
  %1649 = vmatprep.subr.mxu0 0.0
  %1650 = vmatpush1.msra.mxu0 0.0
  %1651 = vmatprep.subr.mxu0 0.0
  %1652 = vmatpush1.msra.mxu0 0.0
  %1653 = vmatprep.subr.mxu0 0.0
  %1654 = vmatpush1.msra.mxu0 0.0
  %1655 = vmatprep.subr.mxu0 0.0
  %1656 = vmatpush1.msra.mxu0 0.0
  %1657 = vmatprep.subr.mxu0 0.0
  %1658 = vmatpush1.msra.mxu0 0.0
  %1659 = vmatprep.subr.mxu0 0.0
  %1660 = vmatpush1.msra.mxu0 0.0
  %1661 = vmatprep.subr.mxu0 0.0
  %1662 = vmatpush1.msra.mxu0 0.0
  %1663 = vmatprep.subr.mxu0 0.0
  %1664 = vmatpush1.msra.mxu0 0.0
  %1665 = vmatprep.subr.mxu0 0.0
  %1666 = vmatpush1.msra.mxu0 0.0
  %1667 = vmatprep.subr.mxu0 0.0
  %1668 = vmatpush1.msra.mxu0 0.0
  %1669 = vmatprep.subr.mxu0 0.0
  %1670 = vmatpush1.msra.mxu0 0.0
  %1671 = vmatprep.subr.mxu0 0.0
  %1672 = vmatpush1.msra.mxu0 0.0
  %1673 = vmatprep.subr.mxu0 0.0
  %1674 = vmatpush1.msra.mxu0 0.0
  %1675 = vmatprep.subr.mxu0 0.0
  %1676 = vmatpush1.msra.mxu0 0.0
  %1677 = vmatprep.subr.mxu0 0.0
  %1678 = vmatpush1.msra.mxu0 0.0
  %1679 = vmatprep.subr.mxu0 0.0
  %1680 = vmatpush1.msra.mxu0 0.0
  %1681 = vmatprep.subr.mxu0 0.0
  %1682 = vmatpush1.msra.mxu0 0.0
  %1683 = vmatprep.subr.mxu0 0.0
  %1684 = vmatpush1.msra.mxu0 0.0
  %1685 = vmatprep.mubr.f32.mxu0 0.0
  %1686 = vmatmul.mubr.f32.gmra.mrb[0].mxu0 %v1619
  %v1687 = vpop.f32.mrb[0].mxu0
  %v1688 = vadd.f32 %v1543, %v1687
  %v1689 = vpop.f32.mrb[0].mxu0
  %v1690 = vadd.f32 %v1545, %v1689
  %1691 = vdwg.mxu0
  %1692 = vmatprep.subr.mxu0 %v514
  %1693 = vmatpush1.msra.mxu0 %v512
  %1694 = vmatprep.subr.mxu0 %v522
  %1695 = vmatpush1.msra.mxu0 %v520
  %1696 = vmatprep.subr.mxu0 %v530
  %1697 = vmatpush1.msra.mxu0 %v528
  %1698 = vmatprep.subr.mxu0 %v538
  %1699 = vmatpush1.msra.mxu0 %v536
  %1700 = vmatprep.subr.mxu0 0.0
  %1701 = vmatpush1.msra.mxu0 0.0
  %1702 = vmatprep.subr.mxu0 0.0
  %1703 = vmatpush1.msra.mxu0 0.0
  %1704 = vmatprep.subr.mxu0 0.0
  %1705 = vmatpush1.msra.mxu0 0.0
  %1706 = vmatprep.subr.mxu0 0.0
  %1707 = vmatpush1.msra.mxu0 0.0
  %1708 = vmatprep.subr.mxu0 0.0
  %1709 = vmatpush1.msra.mxu0 0.0
  %1710 = vmatprep.subr.mxu0 0.0
  %1711 = vmatpush1.msra.mxu0 0.0
  %1712 = vmatprep.subr.mxu0 0.0
  %1713 = vmatpush1.msra.mxu0 0.0
  %1714 = vmatprep.subr.mxu0 0.0
  %1715 = vmatpush1.msra.mxu0 0.0
  %1716 = vmatprep.subr.mxu0 0.0
  %1717 = vmatpush1.msra.mxu0 0.0
  %1718 = vmatprep.subr.mxu0 0.0
  %1719 = vmatpush1.msra.mxu0 0.0
  %1720 = vmatprep.subr.mxu0 0.0
  %1721 = vmatpush1.msra.mxu0 0.0
  %1722 = vmatprep.subr.mxu0 0.0
  %1723 = vmatpush1.msra.mxu0 0.0
  %1724 = vmatprep.subr.mxu0 0.0
  %1725 = vmatpush1.msra.mxu0 0.0
  %1726 = vmatprep.subr.mxu0 0.0
  %1727 = vmatpush1.msra.mxu0 0.0
  %1728 = vmatprep.subr.mxu0 0.0
  %1729 = vmatpush1.msra.mxu0 0.0
  %1730 = vmatprep.subr.mxu0 0.0
  %1731 = vmatpush1.msra.mxu0 0.0
  %1732 = vmatprep.subr.mxu0 0.0
  %1733 = vmatpush1.msra.mxu0 0.0
  %1734 = vmatprep.subr.mxu0 0.0
  %1735 = vmatpush1.msra.mxu0 0.0
  %1736 = vmatprep.subr.mxu0 0.0
  %1737 = vmatpush1.msra.mxu0 0.0
  %1738 = vmatprep.subr.mxu0 0.0
  %1739 = vmatpush1.msra.mxu0 0.0
  %1740 = vmatprep.subr.mxu0 0.0
  %1741 = vmatpush1.msra.mxu0 0.0
  %1742 = vmatprep.subr.mxu0 0.0
  %1743 = vmatpush1.msra.mxu0 0.0
  %1744 = vmatprep.subr.mxu0 0.0
  %1745 = vmatpush1.msra.mxu0 0.0
  %1746 = vmatprep.subr.mxu0 0.0
  %1747 = vmatpush1.msra.mxu0 0.0
  %1748 = vmatprep.subr.mxu0 0.0
  %1749 = vmatpush1.msra.mxu0 0.0
  %1750 = vmatprep.subr.mxu0 0.0
  %1751 = vmatpush1.msra.mxu0 0.0
  %1752 = vmatprep.subr.mxu0 0.0
  %1753 = vmatpush1.msra.mxu0 0.0
  %1754 = vmatprep.subr.mxu0 0.0
  %1755 = vmatpush1.msra.mxu0 0.0
  %1756 = vmatprep.mubr.f32.mxu0 0.0
  %1757 = vmatmul.mubr.f32.gmra.mrb[0].mxu0 %v1619
  %v1758 = vpop.f32.mrb[0].mxu0
  %v1759 = vadd.f32 %v1614, %v1758
  %v1760 = vpop.f32.mrb[0].mxu0
  %v1761 = vadd.f32 %v1616, %v1760
  %1762 = vdwg.mxu0
  %v1763 = vld [vmem:[%s10] sm:$0xf]
  %1765 = vset.pattern.permute.xlu0 0
  %1766 = vperm.xlu0 %1765, %v1763
  %v1767 = vpop.permute.xlu0 %1766
  %v1769 = vadd.f32 %v1688, %v1767
  %v1770 = vadd.f32 %v1690, %v1767
  %v1771 = vadd.f32 %v1759, %v1767
  %v1772 = vadd.f32 %v1761, %v1767
  %v1775 = vcombine.low %v1769, %v1770
  %1777 = vst [vmem:[%s11] sm:$0xff] %v1775
  %v1780 = vcombine.low %v1771, %v1772
  %s1782 = scalar_lea.vmem %s11, 8
  %1783 = vst [vmem:[%s1782] sm:$0xff] %v1780
  // Predicated region
  $region46: #{latent_diffusion_forward.1} parent=0 // pred_check
    _
  $region47: #{latent_diffusion_forward.1} parent=0 // pred_check_branch
    %1785 = sbr.rel (0) target = $region49
  $region48: #{latent_diffusion_forward.1} parent=0 // pred_region
    _
  $region49: #{latent_diffusion_forward.1} parent=0 // pred_fallthru
    _
  // Predicated region
  $region50: #{latent_diffusion_forward.1} parent=0 // pred_check
    _
  $region51: #{latent_diffusion_forward.1} parent=0 // pred_check_branch
    %1787 = sbr.rel (0) target = $region53
  $region52: #{latent_diffusion_forward.1} parent=0 // pred_region
    _
  $region53: #{latent_diffusion_forward.1} parent=0 // pred_fallthru
    _

</llo_original>
